<compile_context>
chip_gen: v7x
topology: tpu7x:2x2x1
jax: 0.10.0
libtpu: 0.0.40
codegen_flags: <defaults>
</compile_context>

<pallas_src>
import math
from functools import partial

import jax
import jax.numpy as jnp
from jax import lax
from jax.experimental import pallas as pl
from jax.experimental.pallas import tpu as pltpu

N_REAL = 3   # cls + 2 image tokens (fixed by the (1, 3, dim_hidden) order_embedding)
N_PAD = 8    # pad tokens to a full sublane tile

# Row layout of the packed per-layer small-parameter array (L, SP_ROWS, Wmax)
ROW_LN1_G, ROW_LN1_B, ROW_B_OUT = 0, 1, 2
ROW_LN2_G, ROW_LN2_B = 3, 4
ROW_B1, ROW_B2 = 5, 6
ROW_S_QKV, ROW_S_OUT, ROW_S1, ROW_S2 = 7, 8, 9, 10
SP_ROWS = 16


def _layernorm(x, g, b, eps=1e-5):
    mu = jnp.mean(x, axis=-1, keepdims=True)
    var = jnp.mean(jnp.square(x - mu), axis=-1, keepdims=True)
    return (x - mu) * lax.rsqrt(var + eps) * g + b


# ---------------------------------------------------------------------------
# Fused kernel: grid=(num_encoders,), one encoder block per grid step.
# Activation is carried in the resident output block; int8 weights are streamed
# per layer and dequantized on the fly (scale applied to the f32 accumulator).
# ---------------------------------------------------------------------------
def encoder_stack_kernel(x_ref, wqkv_ref, wo_ref, w1_ref, w2_ref, sp_ref,
                         o_ref, qkv_sc, attn_sc, h1_sc,
                         *, num_heads, head_dim, dim_tr, dim_inner, dim_mlp,
                         n_real, chunk):
    l = pl.program_id(0)

    @pl.when(l == 0)
    def _():
        o_ref[...] = x_ref[...]          # initialize the carried activation

    x = o_ref[...]                       # (Np, Dt) f32, resident across layers
    npad = x.shape[0]

    sp = sp_ref[0]                       # (SP_ROWS, Wmax) packed small params

    def row(r, w):
        return sp[r:r + 1, :w]           # (1, w)

    # key-padding mask: padded key columns get -1e30 so they never attend
    col = lax.broadcasted_iota(jnp.int32, (npad, npad), 1)
    kmask = jnp.where(col < n_real, 0.0, -1e30)

    # ---------------- pre-LN MSA + residual ----------------
    xn = _layernorm(x, row(ROW_LN1_G, dim_tr), row(ROW_LN1_B, dim_tr))

    # qkv projection, column-chunked: f32 dequant temp stays (Dt, <=chunk)
    for c0 in range(0, 3 * dim_inner, chunk):
        c1 = min(c0 + chunk, 3 * dim_inner)
        w_blk = wqkv_ref[0, :, c0:c1].astype(jnp.float32)
        qkv_sc[:, c0:c1] = (
            jnp.dot(xn, w_blk, preferred_element_type=jnp.float32)
            * sp[ROW_S_QKV:ROW_S_QKV + 1, c0:c1])

    scale = head_dim ** (-0.5)
    # static head loop: q/k/v are ref-sliced from the qkv scratch and each
    # head's output is written straight to the attn scratch, so the per-head
    # live set is tiny (no large value carried across the unrolled loop).
    for h in range(num_heads):
        q = qkv_sc[:, h * head_dim:(h + 1) * head_dim]
        k = qkv_sc[:, dim_inner + h * head_dim:dim_inner + (h + 1) * head_dim]
        v = qkv_sc[:, 2 * dim_inner + h * head_dim:2 * dim_inner + (h + 1) * head_dim]
        dots = lax.dot_general(q, k, (((1,), (1,)), ((), ())),
                               preferred_element_type=jnp.float32) * scale + kmask
        m = jnp.max(dots, axis=-1, keepdims=True)
        e = jnp.exp(dots - m)
        p = e * pl.reciprocal(jnp.sum(e, axis=-1, keepdims=True), approx=True)
        attn_sc[:, h * head_dim:(h + 1) * head_dim] = jnp.dot(
            p, v, preferred_element_type=jnp.float32)

    # single output projection (K-chunked over dim_inner), no per-head adds
    y = None
    for k0 in range(0, dim_inner, chunk):
        k1 = min(k0 + chunk, dim_inner)
        part = jnp.dot(attn_sc[:, k0:k1],
                       wo_ref[0, k0:k1, :].astype(jnp.float32),
                       preferred_element_type=jnp.float32)
        y = part if y is None else y + part
    x = y * row(ROW_S_OUT, dim_tr) + row(ROW_B_OUT, dim_tr) + x

    # ---------------- pre-LN MLP + residual ----------------
    xn = _layernorm(x, row(ROW_LN2_G, dim_tr), row(ROW_LN2_B, dim_tr))
    for c0 in range(0, dim_mlp, chunk):
        c1 = min(c0 + chunk, dim_mlp)
        w_blk = w1_ref[0, :, c0:c1].astype(jnp.float32)
        hcol = (jnp.dot(xn, w_blk, preferred_element_type=jnp.float32)
                * sp[ROW_S1:ROW_S1 + 1, c0:c1]
                + sp[ROW_B1:ROW_B1 + 1, c0:c1])
        # exact GELU (matches F.gelu default)
        h1_sc[:, c0:c1] = 0.5 * hcol * (1.0 + lax.erf(hcol * (2.0 ** -0.5)))

    y = None
    for k0 in range(0, dim_mlp, chunk):
        k1 = min(k0 + chunk, dim_mlp)
        part = jnp.dot(h1_sc[:, k0:k1],
                       w2_ref[0, k0:k1, :].astype(jnp.float32),
                       preferred_element_type=jnp.float32)
        y = part if y is None else y + part
    x = y * row(ROW_S2, dim_tr) + row(ROW_B2, dim_tr) + x

    o_ref[...] = x                       # carry to the next layer / final output


# ---------------------------------------------------------------------------
# Parameters: deterministic synthetic init + int8 per-output-channel quantization
# ---------------------------------------------------------------------------
def _uniform_linear(key, fan_in, fan_out, bias=True):
    k1, k2 = jax.random.split(key)
    bound = 1.0 / math.sqrt(fan_in)
    w = jax.random.uniform(k1, (fan_in, fan_out), jnp.float32, -bound, bound)
    b = (jax.random.uniform(k2, (fan_out,), jnp.float32, -bound, bound)
         if bias else None)
    return w, b


def _quantize_per_col(w):
    """Symmetric per-output-channel int8 quantization, f32 scales."""
    amax = jnp.max(jnp.abs(w), axis=0)
    scale = jnp.maximum(amax, 1e-8) / 127.0
    q = jnp.clip(jnp.round(w / scale), -127.0, 127.0).astype(jnp.int8)
    return q, scale.astype(jnp.float32)


def init_params(key, *, dim_hidden, num_heads, dim_head, num_encoders):
    dim_tr = dim_head                      # transformer model dim
    dim_inner = num_heads * dim_head       # MSA inner dim
    dim_mlp = dim_hidden * 2               # MLP hidden dim (dim_seq * 2 in torch code)
    wmax = max(dim_tr, dim_mlp, 3 * dim_inner)

    keys = jax.random.split(key, 3 + 4 * num_encoders)
    params = {
        "cls_token": jnp.zeros((1, 1, dim_hidden), jnp.float32),
        "order_embedding": jax.random.normal(keys[0], (1, 3, dim_hidden), jnp.float32),
    }
    params["w_tr"], params["b_tr"] = _uniform_linear(keys[1], dim_hidden, dim_tr)
    params["w_seq"], params["b_seq"] = _uniform_linear(keys[2], dim_tr, dim_hidden)

    wqkv_q, wo_q, w1_q, w2_q, sps = [], [], [], [], []
    for lyr in range(num_encoders):
        k_qkv, k_out, k_1, k_2 = keys[3 + 4 * lyr: 3 + 4 * (lyr + 1)]
        w_qkv, _ = _uniform_linear(k_qkv, dim_tr, 3 * dim_inner, bias=False)
        w_out, b_out = _uniform_linear(k_out, dim_inner, dim_tr)
        w1, b1 = _uniform_linear(k_1, dim_tr, dim_mlp)
        w2, b2 = _uniform_linear(k_2, dim_mlp, dim_tr)

        q_qkv, s_qkv = _quantize_per_col(w_qkv)
        q_out, s_out = _quantize_per_col(w_out)
        q_1, s_1 = _quantize_per_col(w1)
        q_2, s_2 = _quantize_per_col(w2)
        wqkv_q.append(q_qkv); wo_q.append(q_out); w1_q.append(q_1); w2_q.append(q_2)

        sp = jnp.zeros((SP_ROWS, wmax), jnp.float32)
        sp = sp.at[ROW_LN1_G, :dim_tr].set(1.0)       # LN gammas = 1
        sp = sp.at[ROW_LN2_G, :dim_tr].set(1.0)       # LN betas stay 0
        sp = sp.at[ROW_B_OUT, :dim_tr].set(b_out)
        sp = sp.at[ROW_B1, :dim_mlp].set(b1)
        sp = sp.at[ROW_B2, :dim_tr].set(b2)
        sp = sp.at[ROW_S_QKV, :3 * dim_inner].set(s_qkv)
        sp = sp.at[ROW_S_OUT, :dim_tr].set(s_out)
        sp = sp.at[ROW_S1, :dim_mlp].set(s_1)
        sp = sp.at[ROW_S2, :dim_tr].set(s_2)
        sps.append(sp)

    params["w_qkv_q"] = jnp.stack(wqkv_q)     # (L, dim_tr, 3*dim_inner) int8
    params["w_out_q"] = jnp.stack(wo_q)       # (L, dim_inner, dim_tr)   int8
    params["w1_q"] = jnp.stack(w1_q)          # (L, dim_tr, dim_mlp)     int8
    params["w2_q"] = jnp.stack(w2_q)          # (L, dim_mlp, dim_tr)     int8
    params["sp"] = jnp.stack(sps)             # (L, SP_ROWS, wmax)       f32
    return params


# ---------------------------------------------------------------------------
# Forward pass
# ---------------------------------------------------------------------------
def transformer_network_forward(img, params, *, num_heads, dim_head, chunk=2048):
    B, n, dim_hidden = img.shape
    assert B == 1 and n + 1 == N_REAL
    dim_tr = dim_head
    dim_inner = num_heads * dim_head
    dim_mlp = dim_hidden * 2
    L, _, wmax = params["sp"].shape

    # Prologue/epilogue projections run once each -> plain XLA dots outside the
    # kernel so their weights are never pinned in VMEM across the layer loop.
    x = (jnp.concatenate([params["cls_token"], img], axis=1)[0]
         + params["order_embedding"][0])                       # (3, dim_hidden)
    x = jnp.dot(x, params["w_tr"]) + params["b_tr"]            # to_trans -> (3, dim_tr)
    x = jnp.pad(x, ((0, N_PAD - N_REAL), (0, 0)))              # (8, dim_tr) full sublane tile

    kernel = partial(encoder_stack_kernel, num_heads=num_heads, head_dim=dim_head,
                     dim_tr=dim_tr, dim_inner=dim_inner, dim_mlp=dim_mlp,
                     n_real=N_REAL, chunk=chunk)

    # -------- footprint-aware buffering / VMEM-limit policy --------
    per_layer_bytes = (dim_tr * 3 * dim_inner + dim_inner * dim_tr
                       + dim_tr * dim_mlp + dim_mlp * dim_tr          # int8 weights
                       + SP_ROWS * wmax * 4)                          # packed f32 params
    scratch_bytes = N_PAD * (3 * dim_inner + dim_inner + dim_mlp + 2 * dim_tr) * 4
    dequant_tmp = 4 * dim_tr * min(chunk, max(3 * dim_inner, dim_mlp, dim_inner))
    need = 2 * per_layer_bytes + scratch_bytes + 2 * dequant_tmp + (4 << 20)
    vmem_limit = int(min(max(need, 32 << 20), 96 << 20))
    tight = need > (48 << 20)      # cannot double-buffer everything on v7x's 64 MiB

    def per_layer(shape, *, single_buffer=False):
        if single_buffer:
            # drop to single buffering on the largest stream only when VMEM-tight
            return pl.BlockSpec((1,) + shape, lambda l: (l,) + (0,) * len(shape),
                                pipeline_mode=pl.Buffered(1))
        return pl.BlockSpec((1,) + shape, lambda l: (l,) + (0,) * len(shape))

    out = pl.pallas_call(
        kernel,
        out_shape=jax.ShapeDtypeStruct((N_PAD, dim_tr), jnp.float32),
        grid=(L,),
        in_specs=[
            pl.BlockSpec((N_PAD, dim_tr), lambda l: (0, 0)),            # x0 (resident)
            per_layer((dim_tr, 3 * dim_inner), single_buffer=tight),    # w_qkv int8
            per_layer((dim_inner, dim_tr)),                             # w_out int8
            per_layer((dim_tr, dim_mlp)),                               # w1   int8
            per_layer((dim_mlp, dim_tr)),                               # w2   int8
            per_layer((SP_ROWS, wmax)),                                 # packed LN/bias/scales
        ],
        out_specs=pl.BlockSpec((N_PAD, dim_tr), lambda l: (0, 0)),      # carried activation
        scratch_shapes=[pltpu.VMEM((N_PAD, 3 * dim_inner), jnp.float32),  # qkv
                        pltpu.VMEM((N_PAD, dim_inner), jnp.float32),      # attn heads
                        pltpu.VMEM((N_PAD, dim_mlp), jnp.float32)],       # MLP hidden
        compiler_params=pltpu.CompilerParams(
            dimension_semantics=("arbitrary",),       # layer axis carries state
            vmem_limit_bytes=vmem_limit),
    )(x, params["w_qkv_q"], params["w_out_q"], params["w1_q"], params["w2_q"],
      params["sp"])

    y = jnp.dot(out[:N_REAL], params["w_seq"]) + params["b_seq"]        # to_seq
    return y[None]                                                      # (1, 3, dim_hidden)


# ---------------------------------------------------------------------------
# Pure-JAX reference (same dequantized weights) for a loose tolerance check
# ---------------------------------------------------------------------------
def reference_forward(img, params, *, num_heads, dim_head):
    dim_hidden = img.shape[-1]
    dim_tr = dim_head
    dim_inner = num_heads * dim_head
    dim_mlp = dim_hidden * 2

    def ln(x, g, b, eps=1e-5):
        mu = jnp.mean(x, axis=-1, keepdims=True)
        var = jnp.mean(jnp.square(x - mu), axis=-1, keepdims=True)
        return (x - mu) / jnp.sqrt(var + eps) * g + b

    x = (jnp.concatenate([params["cls_token"], img], axis=1)[0]
         + params["order_embedding"][0])
    x = x @ params["w_tr"] + params["b_tr"]
    L = params["sp"].shape[0]
    for l in range(L):
        sp = params["sp"][l]
        deq = lambda q, s: q.astype(jnp.float32) * s[None, :]
        wqkv = deq(params["w_qkv_q"][l], sp[ROW_S_QKV, :3 * dim_inner])
        wout = deq(params["w_out_q"][l], sp[ROW_S_OUT, :dim_tr])
        w1 = deq(params["w1_q"][l], sp[ROW_S1, :dim_mlp])
        w2 = deq(params["w2_q"][l], sp[ROW_S2, :dim_tr])

        xn = ln(x, sp[ROW_LN1_G, :dim_tr], sp[ROW_LN1_B, :dim_tr])
        qkv = xn @ wqkv
        n_tok = x.shape[0]
        split = lambda t: t.reshape(n_tok, num_heads, dim_head).transpose(1, 0, 2)
        q = split(qkv[:, :dim_inner])
        k = split(qkv[:, dim_inner:2 * dim_inner])
        v = split(qkv[:, 2 * dim_inner:])
        dots = jnp.einsum("hid,hjd->hij", q, k) * (dim_head ** -0.5)
        attn = jax.nn.softmax(dots, axis=-1)
        o = jnp.einsum("hij,hjd->hid", attn, v).transpose(1, 0, 2).reshape(n_tok, dim_inner)
        x = o @ wout + sp[ROW_B_OUT, :dim_tr] + x

        xn = ln(x, sp[ROW_LN2_G, :dim_tr], sp[ROW_LN2_B, :dim_tr])
        h1 = xn @ w1 + sp[ROW_B1, :dim_mlp]
        h1 = 0.5 * h1 * (1.0 + lax.erf(h1 * (2.0 ** -0.5)))
        x = h1 @ w2 + sp[ROW_B2, :dim_tr] + x

    y = x @ params["w_seq"] + params["b_seq"]
    return y[None]


# ---------------------------------------------------------------------------
if __name__ == "__main__":
    # Small, forward-consistent shapes (module defaults are 4096/768/8 heads/8 layers).
    dim_hidden = 256
    num_heads = 2
    dim_head = 128
    num_encoders = 2

    key = jax.random.PRNGKey(0)
    k_params, k_img = jax.random.split(key)
    params = init_params(k_params, dim_hidden=dim_hidden, num_heads=num_heads,
                         dim_head=dim_head, num_encoders=num_encoders)
    img = jax.random.normal(k_img, (1, 2, dim_hidden), jnp.float32)

    fwd = jax.jit(partial(transformer_network_forward,
                          num_heads=num_heads, dim_head=dim_head))
    out = jax.block_until_ready(fwd(img, params))
    assert out.shape == (1, N_REAL, dim_hidden)
    assert bool(jnp.all(jnp.isfinite(out)))

    # loose check vs a pure-JAX reference built from the same dequantized weights
    # (differences: MXU rounding + approx reciprocal in the softmax denominator)
    ref = reference_forward(img, params, num_heads=num_heads, dim_head=dim_head)
    err = float(jnp.max(jnp.abs(out - ref)))
    tol = 5e-2 * float(jnp.maximum(1.0, jnp.max(jnp.abs(ref))))
    assert err < tol, f"max abs err {err} exceeds tol {tol}"

    print("KERNEL_OK")
</pallas_src>

<mosaic_0001>
module attributes {stable_mosaic.version = 11 : i64} {
  func.func @encoder_stack_kernel(%arg0: i32, %arg1: memref<8x128xf32, #tpu.memory_space<vmem>>, %arg2: memref<1x128x768xi8, #tpu.memory_space<vmem>>, %arg3: memref<1x256x128xi8, #tpu.memory_space<vmem>>, %arg4: memref<1x128x512xi8, #tpu.memory_space<vmem>>, %arg5: memref<1x512x128xi8, #tpu.memory_space<vmem>>, %arg6: memref<1x16x768xf32, #tpu.memory_space<vmem>>, %arg7: memref<8x128xf32, #tpu.memory_space<vmem>>, %arg8: memref<8x768xf32, #tpu.memory_space<vmem>>, %arg9: memref<8x256xf32, #tpu.memory_space<vmem>>, %arg10: memref<8x512xf32, #tpu.memory_space<vmem>>) attributes {dimension_semantics = [#tpu.dimension_semantics<arbitrary>], iteration_bounds = array<i64: 2>, scalar_prefetch = 0 : i64, scratch_operands = 3 : i64, tpu.core_type = #tpu.core_type<tc>, window_params = [{pipeline_mode = #tpu.pipeline_mode<synchronous>, transform_indices = @transform_0, window_bounds = array<i64: 8, 128>}, {transform_indices = @transform_1, window_bounds = array<i64: 1, 128, 768>}, {transform_indices = @transform_2, window_bounds = array<i64: 1, 256, 128>}, {transform_indices = @transform_3, window_bounds = array<i64: 1, 128, 512>}, {transform_indices = @transform_4, window_bounds = array<i64: 1, 512, 128>}, {transform_indices = @transform_5, window_bounds = array<i64: 1, 16, 768>}, {pipeline_mode = #tpu.pipeline_mode<synchronous>, transform_indices = @transform_6, window_bounds = array<i64: 8, 128>}]} {
    %c0_i32 = arith.constant 0 : i32
    %0 = arith.cmpi eq, %arg0, %c0_i32 : i32
    %1 = arith.extui %0 : i1 to i32
    %c0_i32_0 = arith.constant 0 : i32
    %2 = arith.cmpi ne, %1, %c0_i32_0 : i32
    scf.if %2 {
      %c0_66 = arith.constant 0 : index
      %c0_67 = arith.constant 0 : index
      %150 = vector.load %arg1[%c0_66, %c0_67] : memref<8x128xf32, #tpu.memory_space<vmem>>, vector<8x128xf32>
      %c0_68 = arith.constant 0 : index
      %c0_69 = arith.constant 0 : index
      %151 = vector.load %arg7[%c0_68, %c0_69] : memref<8x128xf32, #tpu.memory_space<vmem>>, vector<8x128xf32>
      tpu.vector_store %arg7[%c0_68, %c0_69], %150 {strides = array<i32>} : memref<8x128xf32, #tpu.memory_space<vmem>>, vector<8x128xf32>,
    } else {
    }
    %c0 = arith.constant 0 : index
    %c0_1 = arith.constant 0 : index
    %3 = vector.load %arg7[%c0, %c0_1] : memref<8x128xf32, #tpu.memory_space<vmem>>, vector<8x128xf32>
    %c0_2 = arith.constant 0 : index
    %c0_3 = arith.constant 0 : index
    %c0_4 = arith.constant 0 : index
    %4 = vector.load %arg6[%c0_2, %c0_3, %c0_4] : memref<1x16x768xf32, #tpu.memory_space<vmem>>, vector<1x16x768xf32>
    %5 = vector.shape_cast %4 : vector<1x16x768xf32> to vector<16x768xf32>
    %6 = tpu.iota {dimensions = array<i32: 1>} : vector<8x8xi32>
    %c3_i32 = arith.constant 3 : i32
    %7 = vector.broadcast %c3_i32 : i32 to vector<8x8xi32>
    %8 = arith.cmpi slt, %6, %7 : vector<8x8xi32>
    %cst = arith.constant 0.000000e+00 : f32
    %cst_5 = arith.constant -1.000000e+30 : f32
    %9 = vector.broadcast %cst : f32 to vector<8x8xf32>
    %10 = vector.broadcast %cst_5 : f32 to vector<8x8xf32>
    %11 = arith.select %8, %9, %10 : vector<8x8xi1>, vector<8x8xf32>
    %12 = vector.extract_strided_slice %5 {offsets = [0, 0], sizes = [1, 128], strides = [1, 1]} : vector<16x768xf32> to vector<1x128xf32>
    %13 = vector.extract_strided_slice %5 {offsets = [1, 0], sizes = [1, 128], strides = [1, 1]} : vector<16x768xf32> to vector<1x128xf32>
    %cst_6 = arith.constant dense<0.000000e+00> : vector<8xf32>
    %14 = vector.multi_reduction <add>, %3, %cst_6 [1] : vector<8x128xf32> to vector<8xf32>
    %15 = vector.shape_cast %14 : vector<8xf32> to vector<8x1xf32>
    %cst_7 = arith.constant 1.280000e+02 : f32
    %16 = vector.broadcast %cst_7 : f32 to vector<8x1xf32>
    %17 = arith.divf %15, %16 : vector<8x1xf32>
    %18 = vector.broadcast %17 : vector<8x1xf32> to vector<8x128xf32>
    %19 = arith.subf %3, %18 : vector<8x128xf32>
    %20 = arith.mulf %19, %19 : vector<8x128xf32>
    %cst_8 = arith.constant dense<0.000000e+00> : vector<8xf32>
    %21 = vector.multi_reduction <add>, %20, %cst_8 [1] : vector<8x128xf32> to vector<8xf32>
    %22 = vector.shape_cast %21 : vector<8xf32> to vector<8x1xf32>
    %cst_9 = arith.constant 1.280000e+02 : f32
    %23 = vector.broadcast %cst_9 : f32 to vector<8x1xf32>
    %24 = arith.divf %22, %23 : vector<8x1xf32>
    %25 = vector.broadcast %17 : vector<8x1xf32> to vector<8x128xf32>
    %26 = arith.subf %3, %25 : vector<8x128xf32>
    %cst_10 = arith.constant 9.99999974E-6 : f32
    %27 = vector.broadcast %cst_10 : f32 to vector<8x1xf32>
    %28 = arith.addf %24, %27 : vector<8x1xf32>
    %29 = math.rsqrt %28 : vector<8x1xf32>
    %30 = vector.broadcast %29 : vector<8x1xf32> to vector<8x128xf32>
    %31 = arith.mulf %26, %30 : vector<8x128xf32>
    %32 = vector.broadcast %12 : vector<1x128xf32> to vector<8x128xf32>
    %33 = arith.mulf %31, %32 : vector<8x128xf32>
    %34 = vector.broadcast %13 : vector<1x128xf32> to vector<8x128xf32>
    %35 = arith.addf %33, %34 : vector<8x128xf32>
    %c0_11 = arith.constant 0 : index
    %c0_12 = arith.constant 0 : index
    %c0_13 = arith.constant 0 : index
    %36 = vector.load %arg2[%c0_11, %c0_12, %c0_13] : memref<1x128x768xi8, #tpu.memory_space<vmem>>, vector<1x128x768xi8>
    %37 = vector.shape_cast %36 : vector<1x128x768xi8> to vector<128x768xi8>
    %38 = arith.sitofp %37 : vector<128x768xi8> to vector<128x768xf32>
    %cst_14 = arith.constant dense<0.000000e+00> : vector<8x768xf32>
    %39 = tpu.matmul %35, %38, %cst_14 {dimension_numbers = #tpu.dot_dimension_numbers<[1], [0], [0], [1], [0, 0, 1, 1], [], []>} : vector<8x128xf32>, vector<128x768xf32>, vector<8x768xf32> -> vector<8x768xf32>
    %40 = vector.extract_strided_slice %5 {offsets = [7, 0], sizes = [1, 768], strides = [1, 1]} : vector<16x768xf32> to vector<1x768xf32>
    %41 = vector.broadcast %40 : vector<1x768xf32> to vector<8x768xf32>
    %42 = arith.mulf %39, %41 : vector<8x768xf32>
    %c0_15 = arith.constant 0 : index
    %c0_16 = arith.constant 0 : index
    %43 = vector.load %arg8[%c0_15, %c0_16] : memref<8x768xf32, #tpu.memory_space<vmem>>, vector<8x768xf32>
    tpu.vector_store %arg8[%c0_15, %c0_16], %42 {strides = array<i32>} : memref<8x768xf32, #tpu.memory_space<vmem>>, vector<8x768xf32>,
    %c0_17 = arith.constant 0 : index
    %c0_18 = arith.constant 0 : index
    %44 = vector.load %arg8[%c0_17, %c0_18] : memref<8x768xf32, #tpu.memory_space<vmem>>, vector<8x128xf32>
    %c0_19 = arith.constant 0 : index
    %c256 = arith.constant 256 : index
    %45 = vector.load %arg8[%c0_19, %c256] : memref<8x768xf32, #tpu.memory_space<vmem>>, vector<8x128xf32>
    %c0_20 = arith.constant 0 : index
    %c512 = arith.constant 512 : index
    %46 = vector.load %arg8[%c0_20, %c512] : memref<8x768xf32, #tpu.memory_space<vmem>>, vector<8x128xf32>
    %cst_21 = arith.constant dense<0.000000e+00> : vector<8x8xf32>
    %47 = tpu.matmul %44, %45, %cst_21 {dimension_numbers = #tpu.dot_dimension_numbers<[1], [1], [0], [0], [0, 0, 1, 0], [], []>} : vector<8x128xf32>, vector<8x128xf32>, vector<8x8xf32> -> vector<8x8xf32>
    %cst_22 = arith.constant 0.0883883461 : f32
    %48 = vector.broadcast %cst_22 : f32 to vector<8x8xf32>
    %49 = arith.mulf %47, %48 : vector<8x8xf32>
    %50 = arith.addf %49, %11 : vector<8x8xf32>
    %cst_23 = arith.constant dense<0xFF800000> : vector<8xf32>
    %51 = vector.multi_reduction <maximumf>, %50, %cst_23 [1] : vector<8x8xf32> to vector<8xf32>
    %52 = vector.shape_cast %51 : vector<8xf32> to vector<8x1xf32>
    %53 = vector.broadcast %52 : vector<8x1xf32> to vector<8x8xf32>
    %54 = arith.subf %50, %53 : vector<8x8xf32>
    %55 = math.exp %54 : vector<8x8xf32>
    %cst_24 = arith.constant dense<0.000000e+00> : vector<8xf32>
    %56 = vector.multi_reduction <add>, %55, %cst_24 [1] : vector<8x8xf32> to vector<8xf32>
    %57 = vector.shape_cast %56 : vector<8xf32> to vector<8x1xf32>
    %58 = tpu.reciprocal %57 {approx = true} : vector<8x1xf32> -> vector<8x1xf32>
    %59 = vector.broadcast %58 : vector<8x1xf32> to vector<8x8xf32>
    %60 = arith.mulf %55, %59 : vector<8x8xf32>
    %cst_25 = arith.constant dense<0.000000e+00> : vector<8x128xf32>
    %61 = tpu.matmul %60, %46, %cst_25 {dimension_numbers = #tpu.dot_dimension_numbers<[1], [0], [0], [1], [0, 0, 1, 1], [], []>} : vector<8x8xf32>, vector<8x128xf32>, vector<8x128xf32> -> vector<8x128xf32>
    %c0_26 = arith.constant 0 : index
    %c0_27 = arith.constant 0 : index
    %62 = vector.load %arg9[%c0_26, %c0_27] : memref<8x256xf32, #tpu.memory_space<vmem>>, vector<8x128xf32>
    tpu.vector_store %arg9[%c0_26, %c0_27], %61 {strides = array<i32>} : memref<8x256xf32, #tpu.memory_space<vmem>>, vector<8x128xf32>,
    %c0_28 = arith.constant 0 : index
    %c128 = arith.constant 128 : index
    %63 = vector.load %arg8[%c0_28, %c128] : memref<8x768xf32, #tpu.memory_space<vmem>>, vector<8x128xf32>
    %c0_29 = arith.constant 0 : index
    %c384 = arith.constant 384 : index
    %64 = vector.load %arg8[%c0_29, %c384] : memref<8x768xf32, #tpu.memory_space<vmem>>, vector<8x128xf32>
    %c0_30 = arith.constant 0 : index
    %c640 = arith.constant 640 : index
    %65 = vector.load %arg8[%c0_30, %c640] : memref<8x768xf32, #tpu.memory_space<vmem>>, vector<8x128xf32>
    %cst_31 = arith.constant dense<0.000000e+00> : vector<8x8xf32>
    %66 = tpu.matmul %63, %64, %cst_31 {dimension_numbers = #tpu.dot_dimension_numbers<[1], [1], [0], [0], [0, 0, 1, 0], [], []>} : vector<8x128xf32>, vector<8x128xf32>, vector<8x8xf32> -> vector<8x8xf32>
    %cst_32 = arith.constant 0.0883883461 : f32
    %67 = vector.broadcast %cst_32 : f32 to vector<8x8xf32>
    %68 = arith.mulf %66, %67 : vector<8x8xf32>
    %69 = arith.addf %68, %11 : vector<8x8xf32>
    %cst_33 = arith.constant dense<0xFF800000> : vector<8xf32>
    %70 = vector.multi_reduction <maximumf>, %69, %cst_33 [1] : vector<8x8xf32> to vector<8xf32>
    %71 = vector.shape_cast %70 : vector<8xf32> to vector<8x1xf32>
    %72 = vector.broadcast %71 : vector<8x1xf32> to vector<8x8xf32>
    %73 = arith.subf %69, %72 : vector<8x8xf32>
    %74 = math.exp %73 : vector<8x8xf32>
    %cst_34 = arith.constant dense<0.000000e+00> : vector<8xf32>
    %75 = vector.multi_reduction <add>, %74, %cst_34 [1] : vector<8x8xf32> to vector<8xf32>
    %76 = vector.shape_cast %75 : vector<8xf32> to vector<8x1xf32>
    %77 = tpu.reciprocal %76 {approx = true} : vector<8x1xf32> -> vector<8x1xf32>
    %78 = vector.broadcast %77 : vector<8x1xf32> to vector<8x8xf32>
    %79 = arith.mulf %74, %78 : vector<8x8xf32>
    %cst_35 = arith.constant dense<0.000000e+00> : vector<8x128xf32>
    %80 = tpu.matmul %79, %65, %cst_35 {dimension_numbers = #tpu.dot_dimension_numbers<[1], [0], [0], [1], [0, 0, 1, 1], [], []>} : vector<8x8xf32>, vector<8x128xf32>, vector<8x128xf32> -> vector<8x128xf32>
    %c0_36 = arith.constant 0 : index
    %c128_37 = arith.constant 128 : index
    %81 = vector.load %arg9[%c0_36, %c128_37] : memref<8x256xf32, #tpu.memory_space<vmem>>, vector<8x128xf32>
    tpu.vector_store %arg9[%c0_36, %c128_37], %80 {strides = array<i32>} : memref<8x256xf32, #tpu.memory_space<vmem>>, vector<8x128xf32>,
    %c0_38 = arith.constant 0 : index
    %c0_39 = arith.constant 0 : index
    %82 = vector.load %arg9[%c0_38, %c0_39] : memref<8x256xf32, #tpu.memory_space<vmem>>, vector<8x256xf32>
    %c0_40 = arith.constant 0 : index
    %c0_41 = arith.constant 0 : index
    %c0_42 = arith.constant 0 : index
    %83 = vector.load %arg3[%c0_40, %c0_41, %c0_42] : memref<1x256x128xi8, #tpu.memory_space<vmem>>, vector<1x256x128xi8>
    %84 = vector.shape_cast %83 : vector<1x256x128xi8> to vector<256x128xi8>
    %85 = arith.sitofp %84 : vector<256x128xi8> to vector<256x128xf32>
    %cst_43 = arith.constant dense<0.000000e+00> : vector<8x128xf32>
    %86 = tpu.matmul %82, %85, %cst_43 {dimension_numbers = #tpu.dot_dimension_numbers<[1], [0], [0], [1], [0, 0, 1, 1], [], []>} : vector<8x256xf32>, vector<256x128xf32>, vector<8x128xf32> -> vector<8x128xf32>
    %87 = vector.extract_strided_slice %5 {offsets = [8, 0], sizes = [1, 128], strides = [1, 1]} : vector<16x768xf32> to vector<1x128xf32>
    %88 = vector.broadcast %87 : vector<1x128xf32> to vector<8x128xf32>
    %89 = arith.mulf %86, %88 : vector<8x128xf32>
    %90 = vector.extract_strided_slice %5 {offsets = [2, 0], sizes = [1, 128], strides = [1, 1]} : vector<16x768xf32> to vector<1x128xf32>
    %91 = vector.broadcast %90 : vector<1x128xf32> to vector<8x128xf32>
    %92 = arith.addf %89, %91 : vector<8x128xf32>
    %93 = arith.addf %92, %3 : vector<8x128xf32>
    %94 = vector.extract_strided_slice %5 {offsets = [3, 0], sizes = [1, 128], strides = [1, 1]} : vector<16x768xf32> to vector<1x128xf32>
    %95 = vector.extract_strided_slice %5 {offsets = [4, 0], sizes = [1, 128], strides = [1, 1]} : vector<16x768xf32> to vector<1x128xf32>
    %cst_44 = arith.constant dense<0.000000e+00> : vector<8xf32>
    %96 = vector.multi_reduction <add>, %93, %cst_44 [1] : vector<8x128xf32> to vector<8xf32>
    %97 = vector.shape_cast %96 : vector<8xf32> to vector<8x1xf32>
    %cst_45 = arith.constant 1.280000e+02 : f32
    %98 = vector.broadcast %cst_45 : f32 to vector<8x1xf32>
    %99 = arith.divf %97, %98 : vector<8x1xf32>
    %100 = vector.broadcast %99 : vector<8x1xf32> to vector<8x128xf32>
    %101 = arith.subf %93, %100 : vector<8x128xf32>
    %102 = arith.mulf %101, %101 : vector<8x128xf32>
    %cst_46 = arith.constant dense<0.000000e+00> : vector<8xf32>
    %103 = vector.multi_reduction <add>, %102, %cst_46 [1] : vector<8x128xf32> to vector<8xf32>
    %104 = vector.shape_cast %103 : vector<8xf32> to vector<8x1xf32>
    %cst_47 = arith.constant 1.280000e+02 : f32
    %105 = vector.broadcast %cst_47 : f32 to vector<8x1xf32>
    %106 = arith.divf %104, %105 : vector<8x1xf32>
    %107 = vector.broadcast %99 : vector<8x1xf32> to vector<8x128xf32>
    %108 = arith.subf %93, %107 : vector<8x128xf32>
    %cst_48 = arith.constant 9.99999974E-6 : f32
    %109 = vector.broadcast %cst_48 : f32 to vector<8x1xf32>
    %110 = arith.addf %106, %109 : vector<8x1xf32>
    %111 = math.rsqrt %110 : vector<8x1xf32>
    %112 = vector.broadcast %111 : vector<8x1xf32> to vector<8x128xf32>
    %113 = arith.mulf %108, %112 : vector<8x128xf32>
    %114 = vector.broadcast %94 : vector<1x128xf32> to vector<8x128xf32>
    %115 = arith.mulf %113, %114 : vector<8x128xf32>
    %116 = vector.broadcast %95 : vector<1x128xf32> to vector<8x128xf32>
    %117 = arith.addf %115, %116 : vector<8x128xf32>
    %c0_49 = arith.constant 0 : index
    %c0_50 = arith.constant 0 : index
    %c0_51 = arith.constant 0 : index
    %118 = vector.load %arg4[%c0_49, %c0_50, %c0_51] : memref<1x128x512xi8, #tpu.memory_space<vmem>>, vector<1x128x512xi8>
    %119 = vector.shape_cast %118 : vector<1x128x512xi8> to vector<128x512xi8>
    %120 = arith.sitofp %119 : vector<128x512xi8> to vector<128x512xf32>
    %cst_52 = arith.constant dense<0.000000e+00> : vector<8x512xf32>
    %121 = tpu.matmul %117, %120, %cst_52 {dimension_numbers = #tpu.dot_dimension_numbers<[1], [0], [0], [1], [0, 0, 1, 1], [], []>} : vector<8x128xf32>, vector<128x512xf32>, vector<8x512xf32> -> vector<8x512xf32>
    %122 = vector.extract_strided_slice %5 {offsets = [9, 0], sizes = [1, 512], strides = [1, 1]} : vector<16x768xf32> to vector<1x512xf32>
    %123 = vector.broadcast %122 : vector<1x512xf32> to vector<8x512xf32>
    %124 = arith.mulf %121, %123 : vector<8x512xf32>
    %125 = vector.extract_strided_slice %5 {offsets = [5, 0], sizes = [1, 512], strides = [1, 1]} : vector<16x768xf32> to vector<1x512xf32>
    %126 = vector.broadcast %125 : vector<1x512xf32> to vector<8x512xf32>
    %127 = arith.addf %124, %126 : vector<8x512xf32>
    %cst_53 = arith.constant 5.000000e-01 : f32
    %128 = vector.broadcast %cst_53 : f32 to vector<8x512xf32>
    %129 = arith.mulf %128, %127 : vector<8x512xf32>
    %cst_54 = arith.constant 0.707106769 : f32
    %130 = vector.broadcast %cst_54 : f32 to vector<8x512xf32>
    %131 = arith.mulf %127, %130 : vector<8x512xf32>
    %132 = math.erf %131 : vector<8x512xf32>
    %cst_55 = arith.constant 1.000000e+00 : f32
    %133 = vector.broadcast %cst_55 : f32 to vector<8x512xf32>
    %134 = arith.addf %133, %132 : vector<8x512xf32>
    %135 = arith.mulf %129, %134 : vector<8x512xf32>
    %c0_56 = arith.constant 0 : index
    %c0_57 = arith.constant 0 : index
    %136 = vector.load %arg10[%c0_56, %c0_57] : memref<8x512xf32, #tpu.memory_space<vmem>>, vector<8x512xf32>
    tpu.vector_store %arg10[%c0_56, %c0_57], %135 {strides = array<i32>} : memref<8x512xf32, #tpu.memory_space<vmem>>, vector<8x512xf32>,
    %c0_58 = arith.constant 0 : index
    %c0_59 = arith.constant 0 : index
    %137 = vector.load %arg10[%c0_58, %c0_59] : memref<8x512xf32, #tpu.memory_space<vmem>>, vector<8x512xf32>
    %c0_60 = arith.constant 0 : index
    %c0_61 = arith.constant 0 : index
    %c0_62 = arith.constant 0 : index
    %138 = vector.load %arg5[%c0_60, %c0_61, %c0_62] : memref<1x512x128xi8, #tpu.memory_space<vmem>>, vector<1x512x128xi8>
    %139 = vector.shape_cast %138 : vector<1x512x128xi8> to vector<512x128xi8>
    %140 = arith.sitofp %139 : vector<512x128xi8> to vector<512x128xf32>
    %cst_63 = arith.constant dense<0.000000e+00> : vector<8x128xf32>
    %141 = tpu.matmul %137, %140, %cst_63 {dimension_numbers = #tpu.dot_dimension_numbers<[1], [0], [0], [1], [0, 0, 1, 1], [], []>} : vector<8x512xf32>, vector<512x128xf32>, vector<8x128xf32> -> vector<8x128xf32>
    %142 = vector.extract_strided_slice %5 {offsets = [10, 0], sizes = [1, 128], strides = [1, 1]} : vector<16x768xf32> to vector<1x128xf32>
    %143 = vector.broadcast %142 : vector<1x128xf32> to vector<8x128xf32>
    %144 = arith.mulf %141, %143 : vector<8x128xf32>
    %145 = vector.extract_strided_slice %5 {offsets = [6, 0], sizes = [1, 128], strides = [1, 1]} : vector<16x768xf32> to vector<1x128xf32>
    %146 = vector.broadcast %145 : vector<1x128xf32> to vector<8x128xf32>
    %147 = arith.addf %144, %146 : vector<8x128xf32>
    %148 = arith.addf %147, %93 : vector<8x128xf32>
    %c0_64 = arith.constant 0 : index
    %c0_65 = arith.constant 0 : index
    %149 = vector.load %arg7[%c0_64, %c0_65] : memref<8x128xf32, #tpu.memory_space<vmem>>, vector<8x128xf32>
    tpu.vector_store %arg7[%c0_64, %c0_65], %148 {strides = array<i32>} : memref<8x128xf32, #tpu.memory_space<vmem>>, vector<8x128xf32>,
    return
  }
  func.func @transform_0(%arg0: i32) -> (i32, i32) {
    %c0_i32 = arith.constant 0 : i32
    %c0_i32_0 = arith.constant 0 : i32
    %c0_i32_1 = arith.constant 0 : i32
    return %c0_i32, %c0_i32_0 : i32, i32
  }
  func.func @transform_1(%arg0: i32) -> (i32, i32, i32) {
    %c0_i32 = arith.constant 0 : i32
    %c0_i32_0 = arith.constant 0 : i32
    %c0_i32_1 = arith.constant 0 : i32
    return %arg0, %c0_i32, %c0_i32_0 : i32, i32, i32
  }
  func.func @transform_2(%arg0: i32) -> (i32, i32, i32) {
    %c0_i32 = arith.constant 0 : i32
    %c0_i32_0 = arith.constant 0 : i32
    %c0_i32_1 = arith.constant 0 : i32
    return %arg0, %c0_i32, %c0_i32_0 : i32, i32, i32
  }
  func.func @transform_3(%arg0: i32) -> (i32, i32, i32) {
    %c0_i32 = arith.constant 0 : i32
    %c0_i32_0 = arith.constant 0 : i32
    %c0_i32_1 = arith.constant 0 : i32
    return %arg0, %c0_i32, %c0_i32_0 : i32, i32, i32
  }
  func.func @transform_4(%arg0: i32) -> (i32, i32, i32) {
    %c0_i32 = arith.constant 0 : i32
    %c0_i32_0 = arith.constant 0 : i32
    %c0_i32_1 = arith.constant 0 : i32
    return %arg0, %c0_i32, %c0_i32_0 : i32, i32, i32
  }
  func.func @transform_5(%arg0: i32) -> (i32, i32, i32) {
    %c0_i32 = arith.constant 0 : i32
    %c0_i32_0 = arith.constant 0 : i32
    %c0_i32_1 = arith.constant 0 : i32
    return %arg0, %c0_i32, %c0_i32_0 : i32, i32, i32
  }
  func.func @transform_6(%arg0: i32) -> (i32, i32) {
    %c0_i32 = arith.constant 0 : i32
    %c0_i32_0 = arith.constant 0 : i32
    %c0_i32_1 = arith.constant 0 : i32
    return %c0_i32, %c0_i32_0 : i32, i32
  }
}

</mosaic_0001>

<llo_original>
// kernel: transformer_network_forward.1
$region0: #{transformer_network_forward.1}
  #allocation0 [shape = 'u32[]', space=smem, size = 0x4, offset = 0x4, fixed_abs, tag = 'smem constant byte address 0x4 - core index']
  #allocation1 [shape = 'u32[144,128]{1,0:T(1,128)}', space=vmem, size = 0x12000, scoped, tag = 'internal scratch']
  #allocation2 [shape = 'f32[8,768]{1,0:T(8,128)}', space=vmem, size = 0x6000, scoped, tag = 'scratch operand']
  #allocation3 [shape = 'f32[8,256]{1,0:T(8,128)}', space=vmem, size = 0x2000, scoped, tag = 'scratch operand']
  #allocation4 [shape = 'f32[8,512]{1,0:T(8,128)}', space=vmem, size = 0x4000, scoped, tag = 'scratch operand']
  %s0 = inlined_call_operand.vmem [shape: f32[8,128], index: 0, kind: input, shape index: {}]
  %s1 = inlined_call_operand.hbm [shape: s8[2,128,768], index: 1, kind: input, shape index: {}]
  %s2 = inlined_call_operand.hbm [shape: s8[2,256,128], index: 2, kind: input, shape index: {}]
  %s3 = inlined_call_operand.vmem [shape: s8[2,128,512], index: 3, kind: input, shape index: {}]
  %s4 = inlined_call_operand.hbm [shape: s8[2,512,128], index: 4, kind: input, shape index: {}]
  %s5 = inlined_call_operand.hbm [shape: f32[2,16,768], index: 5, kind: input, shape index: {}]
  %s6 = inlined_call_operand.vmem [shape: f32[8,128], index: 6, kind: output, shape index: {}]
  %s7 = sld [smem:[#allocation0]]
  $region77: #{transformer_network_forward.1} parent=0
    _
  %s9 = ssub.s32 1, %s7
  %s10 = scalar_select 0, %s9, %s7
  $region1: #{transformer_network_forward.1} parent=0
    #allocation5 [shape = 'u8[196608]{0}', space=vmem, size = 0x30000, scoped, tag = 'input window, operand 1']
    #allocation6 [shape = 's32[2]{0}', space=sflag, size = 0x8, scoped, tag = 'scoped memory for transformer_network_forward.1']
    #allocation7 [shape = 'u8[65536]{0}', space=vmem, size = 0x10000, scoped, tag = 'input window, operand 2']
    #allocation8 [shape = 's32[2]{0}', space=sflag, size = 0x8, scoped, tag = 'scoped memory for transformer_network_forward.1']
    #allocation9 [shape = 'u8[131072]{0}', space=vmem, size = 0x20000, scoped, tag = 'input window, operand 4']
    #allocation10 [shape = 'u8[98304]{0}', space=vmem, size = 0x18000, scoped, tag = 'input window, operand 5']
    #allocation11 [shape = 's32[2]{0}', space=sflag, size = 0x8, scoped, tag = 'scoped memory for transformer_network_forward.1']
    %11 = vsyncpa [#allocation6], 0
    %s12 = scalar_lea.sflag [#allocation6], 1
    %13 = vsyncpa %s12, 0
    %14 = vsyncpa [#allocation8], 0
    %s15 = scalar_lea.sflag [#allocation8], 1
    %16 = vsyncpa %s15, 0
    %17 = vsyncpa [#allocation11], 0
    %s18 = scalar_lea.sflag [#allocation11], 1
    %19 = vsyncpa %s18, 0
    loop: start=0, step=1, limit=4
    $region2: #{transformer_network_forward.1} parent=1 // loop_pre_header
      _
    $region3: #{transformer_network_forward.1} parent=1 // loop_header
      %s21 = sphi 0, %s25
      %p22 = scmp.ge.s32.totalorder %s21, 4
      %s29 = sphi 0, %s29
      %s31 = sphi 0, %s29
      %s32 = sphi 0, %s31
      %s46 = sphi 0, %s32
      %s52 = sphi 0, %s54
      %s55 = sphi 0, %s52
      %s56 = sphi 0, %s55
      %s72 = sphi 0, %s56
      %s78 = sphi 0, %s80
      %s81 = sphi 0, %s78
      %s82 = sphi 0, %s81
      %s98 = sphi 0, %s82
      %s104 = sphi 0, %s106
      %s107 = sphi 0, %s104
      %s108 = sphi 0, %s107
      %s124 = sphi 0, %s108
      %s130 = sphi 0, %s132
      %s133 = sphi 0, %s130
      %s134 = sphi 0, %s133
      %s150 = sphi 0, %s134
      %s156 = sphi 0, %s158
      %s159 = sphi 0, %s156
      %s160 = sphi 0, %s159
      %s176 = sphi 0, %s160
      %s180 = sphi 0, %s180
      %s182 = sphi 0, %s180
      %s183 = sphi 0, %s182
      %s197 = sphi 0, %s183
    $region4: #{transformer_network_forward.1} parent=1 // loop_header_branch
      %24 = sbr.rel (%p22) target = $region8
    $region5: #{transformer_network_forward.1} parent=1 // loop_body
      %s26 = ssub.s32 %s21, 1
      %s27 = ssub.s32 %s21, 2
      %s28 = sadd.s32 %s21, 1
      %s30 = sadd.s32 %s29, 1
      %p33 = scmp.eq.s32.totalorder %s21, 1
      %p34 = scmp.ne.s32.totalorder %s29, %s31
      %p35 = scmp.eq.s32.totalorder %s21, 0
      %p36 = por %p34, %p35
      %p37 = scmp.ne.s32.totalorder %s29, %s31
      %p38 = scmp.eq.s32.totalorder %s26, 1
      %p39 = por %p37, %p38
      %p40 = scmp.ne.s32.totalorder %s31, %s32
      %p41 = scmp.eq.s32.totalorder %s26, 0
      %p42 = por %p40, %p41
      %p43 = scmp.ne.s32.totalorder %s31, %s32
      %p44 = scmp.eq.s32.totalorder %s27, 1
      %p45 = por %p43, %p44
      %p47 = scmp.ne.s32.totalorder %s32, %s46
      %p48 = scmp.eq.s32.totalorder %s27, 0
      %p49 = por %p47, %p48
      %s50 = ssub.s32 %s21, %s28
      %p51 = scmp.eq.s32.totalorder %s50, 0
      %s53 = sadd.s32 %s52, 1
      %s54 = scalar_select %p51, %s52, %s53
      %p57 = pneg %p51
      %p58 = scmp.eq.s32.totalorder %s21, 1
      %p59 = por %p57, %p58
      %p60 = scmp.ne.s32.totalorder %s52, %s55
      %p61 = scmp.eq.s32.totalorder %s21, 0
      %p62 = por %p60, %p61
      %p63 = scmp.ne.s32.totalorder %s52, %s55
      %p64 = scmp.eq.s32.totalorder %s26, 1
      %p65 = por %p63, %p64
      %p66 = scmp.ne.s32.totalorder %s55, %s56
      %p67 = scmp.eq.s32.totalorder %s26, 0
      %p68 = por %p66, %p67
      %p69 = scmp.ne.s32.totalorder %s55, %s56
      %p70 = scmp.eq.s32.totalorder %s27, 1
      %p71 = por %p69, %p70
      %p73 = scmp.ne.s32.totalorder %s56, %s72
      %p74 = scmp.eq.s32.totalorder %s27, 0
      %p75 = por %p73, %p74
      %s76 = ssub.s32 %s21, %s28
      %p77 = scmp.eq.s32.totalorder %s76, 0
      %s79 = sadd.s32 %s78, 1
      %s80 = scalar_select %p77, %s78, %s79
      %p83 = pneg %p77
      %p84 = scmp.eq.s32.totalorder %s21, 1
      %p85 = por %p83, %p84
      %p86 = scmp.ne.s32.totalorder %s78, %s81
      %p87 = scmp.eq.s32.totalorder %s21, 0
      %p88 = por %p86, %p87
      %p89 = scmp.ne.s32.totalorder %s78, %s81
      %p90 = scmp.eq.s32.totalorder %s26, 1
      %p91 = por %p89, %p90
      %p92 = scmp.ne.s32.totalorder %s81, %s82
      %p93 = scmp.eq.s32.totalorder %s26, 0
      %p94 = por %p92, %p93
      %p95 = scmp.ne.s32.totalorder %s81, %s82
      %p96 = scmp.eq.s32.totalorder %s27, 1
      %p97 = por %p95, %p96
      %p99 = scmp.ne.s32.totalorder %s82, %s98
      %p100 = scmp.eq.s32.totalorder %s27, 0
      %p101 = por %p99, %p100
      %s102 = ssub.s32 %s21, %s28
      %p103 = scmp.eq.s32.totalorder %s102, 0
      %s105 = sadd.s32 %s104, 1
      %s106 = scalar_select %p103, %s104, %s105
      %p109 = pneg %p103
      %p110 = scmp.eq.s32.totalorder %s21, 1
      %p111 = por %p109, %p110
      %p112 = scmp.ne.s32.totalorder %s104, %s107
      %p113 = scmp.eq.s32.totalorder %s21, 0
      %p114 = por %p112, %p113
      %p115 = scmp.ne.s32.totalorder %s104, %s107
      %p116 = scmp.eq.s32.totalorder %s26, 1
      %p117 = por %p115, %p116
      %p118 = scmp.ne.s32.totalorder %s107, %s108
      %p119 = scmp.eq.s32.totalorder %s26, 0
      %p120 = por %p118, %p119
      %p121 = scmp.ne.s32.totalorder %s107, %s108
      %p122 = scmp.eq.s32.totalorder %s27, 1
      %p123 = por %p121, %p122
      %p125 = scmp.ne.s32.totalorder %s108, %s124
      %p126 = scmp.eq.s32.totalorder %s27, 0
      %p127 = por %p125, %p126
      %s128 = ssub.s32 %s21, %s28
      %p129 = scmp.eq.s32.totalorder %s128, 0
      %s131 = sadd.s32 %s130, 1
      %s132 = scalar_select %p129, %s130, %s131
      %p135 = pneg %p129
      %p136 = scmp.eq.s32.totalorder %s21, 1
      %p137 = por %p135, %p136
      %p138 = scmp.ne.s32.totalorder %s130, %s133
      %p139 = scmp.eq.s32.totalorder %s21, 0
      %p140 = por %p138, %p139
      %p141 = scmp.ne.s32.totalorder %s130, %s133
      %p142 = scmp.eq.s32.totalorder %s26, 1
      %p143 = por %p141, %p142
      %p144 = scmp.ne.s32.totalorder %s133, %s134
      %p145 = scmp.eq.s32.totalorder %s26, 0
      %p146 = por %p144, %p145
      %p147 = scmp.ne.s32.totalorder %s133, %s134
      %p148 = scmp.eq.s32.totalorder %s27, 1
      %p149 = por %p147, %p148
      %p151 = scmp.ne.s32.totalorder %s134, %s150
      %p152 = scmp.eq.s32.totalorder %s27, 0
      %p153 = por %p151, %p152
      %s154 = ssub.s32 %s21, %s28
      %p155 = scmp.eq.s32.totalorder %s154, 0
      %s157 = sadd.s32 %s156, 1
      %s158 = scalar_select %p155, %s156, %s157
      %p161 = pneg %p155
      %p162 = scmp.eq.s32.totalorder %s21, 1
      %p163 = por %p161, %p162
      %p164 = scmp.ne.s32.totalorder %s156, %s159
      %p165 = scmp.eq.s32.totalorder %s21, 0
      %p166 = por %p164, %p165
      %p167 = scmp.ne.s32.totalorder %s156, %s159
      %p168 = scmp.eq.s32.totalorder %s26, 1
      %p169 = por %p167, %p168
      %p170 = scmp.ne.s32.totalorder %s159, %s160
      %p171 = scmp.eq.s32.totalorder %s26, 0
      %p172 = por %p170, %p171
      %p173 = scmp.ne.s32.totalorder %s159, %s160
      %p174 = scmp.eq.s32.totalorder %s27, 1
      %p175 = por %p173, %p174
      %p177 = scmp.ne.s32.totalorder %s160, %s176
      %p178 = scmp.eq.s32.totalorder %s27, 0
      %p179 = por %p177, %p178
      %s181 = sadd.s32 %s180, 1
      %p184 = scmp.eq.s32.totalorder %s21, 1
      %p185 = scmp.ne.s32.totalorder %s180, %s182
      %p186 = scmp.eq.s32.totalorder %s21, 0
      %p187 = por %p185, %p186
      %p188 = scmp.ne.s32.totalorder %s180, %s182
      %p189 = scmp.eq.s32.totalorder %s26, 1
      %p190 = por %p188, %p189
      %p191 = scmp.ne.s32.totalorder %s182, %s183
      %p192 = scmp.eq.s32.totalorder %s26, 0
      %p193 = por %p191, %p192
      %p194 = scmp.ne.s32.totalorder %s182, %s183
      %p195 = scmp.eq.s32.totalorder %s27, 1
      %p196 = por %p194, %p195
      %p198 = scmp.ne.s32.totalorder %s183, %s197
      %p199 = scmp.eq.s32.totalorder %s27, 0
      %p200 = por %p198, %p199
      %p201 = scmp.le.s32.totalorder 1, %s21
      %p202 = scmp.lt.s32.totalorder %s21, 3
      %p203 = pnand %p201, %p202
      %p204 = pneg %p203
      // Predicated region
      $region9: #{transformer_network_forward.1} parent=5 // pred_check
        _
      $region10: #{transformer_network_forward.1} parent=5 // pred_check_branch
        %206 = sbr.rel (%p203) target = $region12
      $region11: #{transformer_network_forward.1} parent=5 // pred_region
        %s207 = ssub.s32 %s21, 1
        // Predicated region
        $region13: #{transformer_network_forward.1} parent=11 // pred_check
          %p208 = pneg %p42
        $region14: #{transformer_network_forward.1} parent=11 // pred_check_branch
          %210 = sbr.rel (%p208) target = $region16
        $region15: #{transformer_network_forward.1} parent=11 // pred_region
          _
        $region16: #{transformer_network_forward.1} parent=11 // pred_fallthru
          _
      $region12: #{transformer_network_forward.1} parent=5 // pred_fallthru
        _
      %p211 = scmp.lt.s32.totalorder %s21, 2
      // Predicated region
      $region17: #{transformer_network_forward.1} parent=5 // pred_check
        %p212 = pneg %p211
      $region18: #{transformer_network_forward.1} parent=5 // pred_check_branch
        %214 = sbr.rel (%p212) target = $region20
      $region19: #{transformer_network_forward.1} parent=5 // pred_region
        // Predicated region
        $region21: #{transformer_network_forward.1} parent=19 // pred_check
          %p215 = pneg %p62
        $region22: #{transformer_network_forward.1} parent=19 // pred_check_branch
          %217 = sbr.rel (%p215) target = $region24
        $region23: #{transformer_network_forward.1} parent=19 // pred_region
          %s218 = sand.u32 %s52, 1
          %s219 = scalar_lea.sflag [#allocation6], %s218
          %s220 = sand.u32 %s52, 1
          %s221 = smul.addr %s220, 192
          %s222 = scalar_lea.vmem [#allocation5], %s221
          %s224 = ssub.s32 3072, 3072
          %225 = vsyncadd %s219, %s224
          %s226 = smul.addr %s21, 24
          %s227 = smul.addr %s226, 128
          %s228 = scalar_lea.hbm %s1, %s227
          %s229 = sshll.u32 %s222, 4
          %s230 = int_to_ptr.vmem [resolvable:$true] %s229
          %235 = dma.hbm_to_vmem [thread:$0]  %s228, 3072, %s230, %s219, 768, 768, 48
        $region24: #{transformer_network_forward.1} parent=19 // pred_fallthru
          _
        // Predicated region
        $region25: #{transformer_network_forward.1} parent=19 // pred_check
          %p236 = pneg %p88
        $region26: #{transformer_network_forward.1} parent=19 // pred_check_branch
          %238 = sbr.rel (%p236) target = $region28
        $region27: #{transformer_network_forward.1} parent=19 // pred_region
          %s239 = sand.u32 %s21, 1
          %s240 = scalar_lea.sflag [#allocation8], %s239
          %s241 = sand.u32 %s78, 1
          %s242 = smul.addr %s241, 64
          %s243 = scalar_lea.vmem [#allocation7], %s242
          %s245 = ssub.s32 1024, 1024
          %246 = vsyncadd %s240, %s245
          %s247 = smul.addr %s21, 8
          %s248 = smul.addr %s247, 128
          %s249 = scalar_lea.hbm %s2, %s248
          %s250 = sshll.u32 %s243, 4
          %s251 = int_to_ptr.vmem [resolvable:$true] %s250
          %256 = dma.hbm_to_vmem [thread:$0]  %s249, 1024, %s251, %s240, 128, 128, 8
        $region28: #{transformer_network_forward.1} parent=19 // pred_fallthru
          _
        // Predicated region
        $region29: #{transformer_network_forward.1} parent=19 // pred_check
          %p257 = pneg %p114
        $region30: #{transformer_network_forward.1} parent=19 // pred_check_branch
          %259 = sbr.rel (%p257) target = $region32
        $region31: #{transformer_network_forward.1} parent=19 // pred_region
          %p260 = scmp.lt.s32.totalorder %s21, 1
          %s261 = scalar_select %p260, %s21, 1
          %s262 = smul.addr %s261, 16
          %s263 = smul.addr %s262, 8
          %s264 = scalar_lea.vmem %s3, %s263
        $region32: #{transformer_network_forward.1} parent=19 // pred_fallthru
          _
        // Predicated region
        $region33: #{transformer_network_forward.1} parent=19 // pred_check
          %p265 = pneg %p140
        $region34: #{transformer_network_forward.1} parent=19 // pred_check_branch
          %267 = sbr.rel (%p265) target = $region36
        $region35: #{transformer_network_forward.1} parent=19 // pred_region
          %s268 = sand.u32 %s21, 1
          %s269 = scalar_lea.sflag [#allocation8], %s268
          %s270 = sand.u32 %s130, 1
          %s271 = smul.addr %s270, 128
          %s272 = scalar_lea.vmem [#allocation9], %s271
          %s274 = ssub.s32 2048, 2048
          %275 = vsyncadd %s269, %s274
          %s276 = smul.addr %s21, 16
          %s277 = smul.addr %s276, 128
          %s278 = scalar_lea.hbm %s4, %s277
          %s279 = sshll.u32 %s272, 4
          %s280 = int_to_ptr.vmem [resolvable:$true] %s279
          %285 = dma.hbm_to_vmem [thread:$0]  %s278, 2048, %s280, %s269, 128, 128, 8
        $region36: #{transformer_network_forward.1} parent=19 // pred_fallthru
          _
        // Predicated region
        $region37: #{transformer_network_forward.1} parent=19 // pred_check
          %p286 = pneg %p166
        $region38: #{transformer_network_forward.1} parent=19 // pred_check_branch
          %288 = sbr.rel (%p286) target = $region40
        $region39: #{transformer_network_forward.1} parent=19 // pred_region
          %s289 = sand.u32 %s156, 1
          %s290 = scalar_lea.sflag [#allocation11], %s289
          %s291 = sand.u32 %s156, 1
          %s292 = smul.addr %s291, 96
          %s293 = scalar_lea.vmem [#allocation10], %s292
          %s295 = ssub.s32 1536, 1536
          %296 = vsyncadd %s290, %s295
          %s297 = smul.addr %s21, 12
          %s298 = smul.addr %s297, 128
          %s299 = scalar_lea.hbm %s5, %s298
          %s300 = sshll.u32 %s293, 4
          %s301 = int_to_ptr.vmem [resolvable:$true] %s300
          %306 = dma.hbm_to_vmem [thread:$0]  %s299, 1536, %s301, %s290, 768, 768, 48
        $region40: #{transformer_network_forward.1} parent=19 // pred_fallthru
          _
      $region20: #{transformer_network_forward.1} parent=5 // pred_fallthru
        _
      %p307 = scmp.le.s32.totalorder 1, %s21
      %p308 = scmp.lt.s32.totalorder %s21, 3
      %p309 = pnand %p307, %p308
      %p310 = pneg %p309
      // Predicated region
      $region41: #{transformer_network_forward.1} parent=5 // pred_check
        _
      $region42: #{transformer_network_forward.1} parent=5 // pred_check_branch
        %312 = sbr.rel (%p309) target = $region44
      $region43: #{transformer_network_forward.1} parent=5 // pred_region
        %s313 = ssub.s32 %s21, 1
        %s314 = sand.u32 %s55, 1
        %s315 = scalar_lea.sflag [#allocation6], %s314
        %s316 = sand.u32 %s55, 1
        %s317 = smul.addr %s316, 192
        %s318 = scalar_lea.vmem [#allocation5], %s317
        // Predicated region
        $region45: #{transformer_network_forward.1} parent=43 // pred_check
          %p319 = pneg %p68
        $region46: #{transformer_network_forward.1} parent=43 // pred_check_branch
          %321 = sbr.rel (%p319) target = $region48
        $region47: #{transformer_network_forward.1} parent=43 // pred_region
          %322 = dma.done %s315, 3072
        $region48: #{transformer_network_forward.1} parent=43 // pred_fallthru
          _
        %s323 = sand.u32 %s26, 1
        %s324 = scalar_lea.sflag [#allocation8], %s323
        %s325 = sand.u32 %s81, 1
        %s326 = smul.addr %s325, 64
        %s327 = scalar_lea.vmem [#allocation7], %s326
        // Predicated region
        $region49: #{transformer_network_forward.1} parent=43 // pred_check
          %p328 = pneg %p94
        $region50: #{transformer_network_forward.1} parent=43 // pred_check_branch
          %330 = sbr.rel (%p328) target = $region52
        $region51: #{transformer_network_forward.1} parent=43 // pred_region
          %331 = dma.done %s324, 1024
        $region52: #{transformer_network_forward.1} parent=43 // pred_fallthru
          _
        %s332 = sand.u32 %s26, 1
        %s333 = scalar_lea.sflag [#allocation8], %s332
        %s334 = sand.u32 %s133, 1
        %s335 = smul.addr %s334, 128
        %s336 = scalar_lea.vmem [#allocation9], %s335
        // Predicated region
        $region53: #{transformer_network_forward.1} parent=43 // pred_check
          %p337 = pneg %p146
        $region54: #{transformer_network_forward.1} parent=43 // pred_check_branch
          %339 = sbr.rel (%p337) target = $region56
        $region55: #{transformer_network_forward.1} parent=43 // pred_region
          %340 = dma.done %s333, 2048
        $region56: #{transformer_network_forward.1} parent=43 // pred_fallthru
          _
        %s341 = sand.u32 %s159, 1
        %s342 = scalar_lea.sflag [#allocation11], %s341
        %s343 = sand.u32 %s159, 1
        %s344 = smul.addr %s343, 96
        %s345 = scalar_lea.vmem [#allocation10], %s344
        // Predicated region
        $region57: #{transformer_network_forward.1} parent=43 // pred_check
          %p346 = pneg %p172
        $region58: #{transformer_network_forward.1} parent=43 // pred_check_branch
          %348 = sbr.rel (%p346) target = $region60
        $region59: #{transformer_network_forward.1} parent=43 // pred_region
          %349 = dma.done %s342, 1536
        $region60: #{transformer_network_forward.1} parent=43 // pred_fallthru
          _
        %p350 = pneg %p42
        %p351 = pneg %p39
        %s352 = sand.u32 %s55, 1
        %s353 = scalar_lea.sflag [#allocation6], %s352
        %s354 = sand.u32 %s55, 1
        %s355 = smul.addr %s354, 192
        %s356 = scalar_lea.vmem [#allocation5], %s355
        %p357 = pneg %p68
        %p358 = pneg %p65
        %s359 = sand.u32 %s26, 1
        %s360 = scalar_lea.sflag [#allocation8], %s359
        %s361 = sand.u32 %s81, 1
        %s362 = smul.addr %s361, 64
        %s363 = scalar_lea.vmem [#allocation7], %s362
        %p364 = pneg %p94
        %p365 = pneg %p91
        %p366 = scmp.lt.s32.totalorder %s26, 1
        %s367 = scalar_select %p366, %s26, 1
        %s368 = smul.addr %s367, 16
        %s369 = smul.addr %s368, 8
        %s370 = scalar_lea.vmem %s3, %s369
        %p371 = pneg %p120
        %p372 = pneg %p117
        %s373 = sand.u32 %s26, 1
        %s374 = scalar_lea.sflag [#allocation8], %s373
        %s375 = sand.u32 %s133, 1
        %s376 = smul.addr %s375, 128
        %s377 = scalar_lea.vmem [#allocation9], %s376
        %p378 = pneg %p146
        %p379 = pneg %p143
        %s380 = sand.u32 %s159, 1
        %s381 = scalar_lea.sflag [#allocation11], %s380
        %s382 = sand.u32 %s159, 1
        %s383 = smul.addr %s382, 96
        %s384 = scalar_lea.vmem [#allocation10], %s383
        %p385 = pneg %p172
        %p386 = pneg %p169
        %p387 = pneg %p193
        %p388 = pneg %p190
        %p389 = scmp.lt.s32.totalorder %s26, 1
        %s390 = scalar_select %p389, %s26, 1
        %s391 = smul.addr %s390, 16
        %s392 = smul.addr %s391, 8
        %s393 = scalar_lea.vmem %s3, %s392
        %p394 = scmp.eq.s32.totalorder %s26, 0
        // Predicated region
        $region61: #{transformer_network_forward.1} parent=43 // pred_check
          %p395 = pneg %p394
        $region62: #{transformer_network_forward.1} parent=43 // pred_check_branch
          %397 = sbr.rel (%p395) target = $region64
        $region63: #{transformer_network_forward.1} parent=43 // pred_region
          %v398 = vld [vmem:[%s0] sm:$0xff]
          %399 = vst [vmem:[%s6] sm:$0xff] %v398
        $region64: #{transformer_network_forward.1} parent=43 // pred_fallthru
          _
        %v400 = vld [vmem:[%s6] sm:$0xff]
        %v401 = vld [vmem:[%s345] sm:$0xff]
        %v402 = vld [vmem:[%s345 + $0x8] sm:$0xff]
        %v403 = vld [vmem:[%s345 + $0x10] sm:$0xff]
        %v404 = vld [vmem:[%s345 + $0x18] sm:$0xff]
        %v405 = vld [vmem:[%s345 + $0x20] sm:$0xff]
        %v406 = vld [vmem:[%s345 + $0x28] sm:$0xff]
        %v407 = vld [vmem:[%s345 + $0x30] sm:$0xff]
        %v408 = vld [vmem:[%s345 + $0x38] sm:$0xff]
        %v409 = vld [vmem:[%s345 + $0x40] sm:$0xff]
        %v410 = vld [vmem:[%s345 + $0x48] sm:$0xff]
        %v411 = vlaneseq
        %v412 = vand.u32 %v411, 127
        %vm413 = vcmp.lt.s32.totalorder %v412, 3
        %v414 = vsel %vm413, 0.0, -1e+30
        %415 = vadd.xlane.f32.xlu0 %v400
        %v416 = vpop.xlane.xlu0 %415
        %v417 = vrcp.pop 128.0
        %v418 = vmul.f32 %v416, %v417
        %v419 = vsub.f32 %v400, %v418
        %v420 = vmul.f32 %v419, %v419
        %421 = vadd.xlane.f32.xlu0 %v420
        %v422 = vpop.xlane.xlu0 %421
        %v423 = vmul.f32 %v422, %v417
        %v424 = vadd.f32 %v423, 1e-05
        %v425 = vrsqrt.pop %v424
        %v426 = vmul.f32 %v419, %v425
        %v427 = vlaneseq
        %v428 = vshrl.u32 %v427, 7
        %v429 = vsub.s32 0, %v428
        %v430 = vrot.slane %v401, %v429
        %v431 = vmul.f32 %v426, %v430
        %v432 = vlaneseq
        %v433 = vshrl.u32 %v432, 7
        %v434 = vsub.s32 1, %v433
        %v435 = vrot.slane %v401, %v434
        %v436 = vadd.f32 %v431, %v435
        %v437 = vld [vmem:[%s318] sm:$0xff]
        %v438 = vld [vmem:[%s318 + $0x8] sm:$0xff]
        %v439 = vld [vmem:[%s318 + $0x10] sm:$0xff]
        %v440 = vld [vmem:[%s318 + $0x18] sm:$0xff]
        %v441 = vld [vmem:[%s318 + $0x20] sm:$0xff]
        %v442 = vld [vmem:[%s318 + $0x28] sm:$0xff]
        %v443 = vld [vmem:[%s318 + $0x30] sm:$0xff]
        %v444 = vld [vmem:[%s318 + $0x38] sm:$0xff]
        %v445 = vld [vmem:[%s318 + $0x40] sm:$0xff]
        %v446 = vld [vmem:[%s318 + $0x48] sm:$0xff]
        %v447 = vld [vmem:[%s318 + $0x50] sm:$0xff]
        %v448 = vld [vmem:[%s318 + $0x58] sm:$0xff]
        %v449 = vld [vmem:[%s318 + $0x60] sm:$0xff]
        %v450 = vld [vmem:[%s318 + $0x68] sm:$0xff]
        %v451 = vld [vmem:[%s318 + $0x70] sm:$0xff]
        %v452 = vld [vmem:[%s318 + $0x78] sm:$0xff]
        %v453 = vld [vmem:[%s318 + $0x80] sm:$0xff]
        %v454 = vld [vmem:[%s318 + $0x88] sm:$0xff]
        %v455 = vld [vmem:[%s318 + $0x90] sm:$0xff]
        %v456 = vld [vmem:[%s318 + $0x98] sm:$0xff]
        %v457 = vld [vmem:[%s318 + $0xa0] sm:$0xff]
        %v458 = vld [vmem:[%s318 + $0xa8] sm:$0xff]
        %v459 = vld [vmem:[%s318 + $0xb0] sm:$0xff]
        %v460 = vld [vmem:[%s318 + $0xb8] sm:$0xff]
        %v461 = vunpack.c.0.s8 %v437
        %v462 = vunpack.c.0.s8 %v438
        %v463 = vunpack.c.0.s8 %v439
        %v464 = vunpack.c.0.s8 %v440
        %v465 = vunpack.c.0.s8 %v441
        %v466 = vunpack.c.0.s8 %v442
        %v467 = vunpack.c.1.s8 %v437
        %v468 = vunpack.c.1.s8 %v438
        %v469 = vunpack.c.1.s8 %v439
        %v470 = vunpack.c.1.s8 %v440
        %v471 = vunpack.c.1.s8 %v441
        %v472 = vunpack.c.1.s8 %v442
        %v473 = vunpack.c.2.s8 %v437
        %v474 = vunpack.c.2.s8 %v438
        %v475 = vunpack.c.2.s8 %v439
        %v476 = vunpack.c.2.s8 %v440
        %v477 = vunpack.c.2.s8 %v441
        %v478 = vunpack.c.2.s8 %v442
        %v479 = vunpack.c.3.s8 %v437
        %v480 = vunpack.c.3.s8 %v438
        %v481 = vunpack.c.3.s8 %v439
        %v482 = vunpack.c.3.s8 %v440
        %v483 = vunpack.c.3.s8 %v441
        %v484 = vunpack.c.3.s8 %v442
        %v485 = vunpack.c.0.s8 %v443
        %v486 = vunpack.c.0.s8 %v444
        %v487 = vunpack.c.0.s8 %v445
        %v488 = vunpack.c.0.s8 %v446
        %v489 = vunpack.c.0.s8 %v447
        %v490 = vunpack.c.0.s8 %v448
        %v491 = vunpack.c.1.s8 %v443
        %v492 = vunpack.c.1.s8 %v444
        %v493 = vunpack.c.1.s8 %v445
        %v494 = vunpack.c.1.s8 %v446
        %v495 = vunpack.c.1.s8 %v447
        %v496 = vunpack.c.1.s8 %v448
        %v497 = vunpack.c.2.s8 %v443
        %v498 = vunpack.c.2.s8 %v444
        %v499 = vunpack.c.2.s8 %v445
        %v500 = vunpack.c.2.s8 %v446
        %v501 = vunpack.c.2.s8 %v447
        %v502 = vunpack.c.2.s8 %v448
        %v503 = vunpack.c.3.s8 %v443
        %v504 = vunpack.c.3.s8 %v444
        %v505 = vunpack.c.3.s8 %v445
        %v506 = vunpack.c.3.s8 %v446
        %v507 = vunpack.c.3.s8 %v447
        %v508 = vunpack.c.3.s8 %v448
        %v509 = vunpack.c.0.s8 %v449
        %v510 = vunpack.c.0.s8 %v450
        %v511 = vunpack.c.0.s8 %v451
        %v512 = vunpack.c.0.s8 %v452
        %v513 = vunpack.c.0.s8 %v453
        %v514 = vunpack.c.0.s8 %v454
        %v515 = vunpack.c.1.s8 %v449
        %v516 = vunpack.c.1.s8 %v450
        %v517 = vunpack.c.1.s8 %v451
        %v518 = vunpack.c.1.s8 %v452
        %v519 = vunpack.c.1.s8 %v453
        %v520 = vunpack.c.1.s8 %v454
        %v521 = vunpack.c.2.s8 %v449
        %v522 = vunpack.c.2.s8 %v450
        %v523 = vunpack.c.2.s8 %v451
        %v524 = vunpack.c.2.s8 %v452
        %v525 = vunpack.c.2.s8 %v453
        %v526 = vunpack.c.2.s8 %v454
        %v527 = vunpack.c.3.s8 %v449
        %v528 = vunpack.c.3.s8 %v450
        %v529 = vunpack.c.3.s8 %v451
        %v530 = vunpack.c.3.s8 %v452
        %v531 = vunpack.c.3.s8 %v453
        %v532 = vunpack.c.3.s8 %v454
        %v533 = vunpack.c.0.s8 %v455
        %v534 = vunpack.c.0.s8 %v456
        %v535 = vunpack.c.0.s8 %v457
        %v536 = vunpack.c.0.s8 %v458
        %v537 = vunpack.c.0.s8 %v459
        %v538 = vunpack.c.0.s8 %v460
        %v539 = vunpack.c.1.s8 %v455
        %v540 = vunpack.c.1.s8 %v456
        %v541 = vunpack.c.1.s8 %v457
        %v542 = vunpack.c.1.s8 %v458
        %v543 = vunpack.c.1.s8 %v459
        %v544 = vunpack.c.1.s8 %v460
        %v545 = vunpack.c.2.s8 %v455
        %v546 = vunpack.c.2.s8 %v456
        %v547 = vunpack.c.2.s8 %v457
        %v548 = vunpack.c.2.s8 %v458
        %v549 = vunpack.c.2.s8 %v459
        %v550 = vunpack.c.2.s8 %v460
        %v551 = vunpack.c.3.s8 %v455
        %v552 = vunpack.c.3.s8 %v456
        %v553 = vunpack.c.3.s8 %v457
        %v554 = vunpack.c.3.s8 %v458
        %v555 = vunpack.c.3.s8 %v459
        %v556 = vunpack.c.3.s8 %v460
        %v557 = vcvt.s32.f32 %v461
        %v558 = vcvt.s32.f32 %v462
        %v559 = vcvt.s32.f32 %v463
        %v560 = vcvt.s32.f32 %v464
        %v561 = vcvt.s32.f32 %v465
        %v562 = vcvt.s32.f32 %v466
        %v563 = vcvt.s32.f32 %v467
        %v564 = vcvt.s32.f32 %v468
        %v565 = vcvt.s32.f32 %v469
        %v566 = vcvt.s32.f32 %v470
        %v567 = vcvt.s32.f32 %v471
        %v568 = vcvt.s32.f32 %v472
        %v569 = vcvt.s32.f32 %v473
        %v570 = vcvt.s32.f32 %v474
        %v571 = vcvt.s32.f32 %v475
        %v572 = vcvt.s32.f32 %v476
        %v573 = vcvt.s32.f32 %v477
        %v574 = vcvt.s32.f32 %v478
        %v575 = vcvt.s32.f32 %v479
        %v576 = vcvt.s32.f32 %v480
        %v577 = vcvt.s32.f32 %v481
        %v578 = vcvt.s32.f32 %v482
        %v579 = vcvt.s32.f32 %v483
        %v580 = vcvt.s32.f32 %v484
        %v581 = vcvt.s32.f32 %v485
        %v582 = vcvt.s32.f32 %v486
        %v583 = vcvt.s32.f32 %v487
        %v584 = vcvt.s32.f32 %v488
        %v585 = vcvt.s32.f32 %v489
        %v586 = vcvt.s32.f32 %v490
        %v587 = vcvt.s32.f32 %v491
        %v588 = vcvt.s32.f32 %v492
        %v589 = vcvt.s32.f32 %v493
        %v590 = vcvt.s32.f32 %v494
        %v591 = vcvt.s32.f32 %v495
        %v592 = vcvt.s32.f32 %v496
        %v593 = vcvt.s32.f32 %v497
        %v594 = vcvt.s32.f32 %v498
        %v595 = vcvt.s32.f32 %v499
        %v596 = vcvt.s32.f32 %v500
        %v597 = vcvt.s32.f32 %v501
        %v598 = vcvt.s32.f32 %v502
        %v599 = vcvt.s32.f32 %v503
        %v600 = vcvt.s32.f32 %v504
        %v601 = vcvt.s32.f32 %v505
        %v602 = vcvt.s32.f32 %v506
        %v603 = vcvt.s32.f32 %v507
        %v604 = vcvt.s32.f32 %v508
        %v605 = vcvt.s32.f32 %v509
        %v606 = vcvt.s32.f32 %v510
        %v607 = vcvt.s32.f32 %v511
        %v608 = vcvt.s32.f32 %v512
        %v609 = vcvt.s32.f32 %v513
        %v610 = vcvt.s32.f32 %v514
        %v611 = vcvt.s32.f32 %v515
        %v612 = vcvt.s32.f32 %v516
        %v613 = vcvt.s32.f32 %v517
        %v614 = vcvt.s32.f32 %v518
        %v615 = vcvt.s32.f32 %v519
        %v616 = vcvt.s32.f32 %v520
        %v617 = vcvt.s32.f32 %v521
        %v618 = vcvt.s32.f32 %v522
        %v619 = vcvt.s32.f32 %v523
        %v620 = vcvt.s32.f32 %v524
        %v621 = vcvt.s32.f32 %v525
        %v622 = vcvt.s32.f32 %v526
        %v623 = vcvt.s32.f32 %v527
        %v624 = vcvt.s32.f32 %v528
        %v625 = vcvt.s32.f32 %v529
        %v626 = vcvt.s32.f32 %v530
        %v627 = vcvt.s32.f32 %v531
        %v628 = vcvt.s32.f32 %v532
        %v629 = vcvt.s32.f32 %v533
        %v630 = vcvt.s32.f32 %v534
        %v631 = vcvt.s32.f32 %v535
        %v632 = vcvt.s32.f32 %v536
        %v633 = vcvt.s32.f32 %v537
        %v634 = vcvt.s32.f32 %v538
        %v635 = vcvt.s32.f32 %v539
        %v636 = vcvt.s32.f32 %v540
        %v637 = vcvt.s32.f32 %v541
        %v638 = vcvt.s32.f32 %v542
        %v639 = vcvt.s32.f32 %v543
        %v640 = vcvt.s32.f32 %v544
        %v641 = vcvt.s32.f32 %v545
        %v642 = vcvt.s32.f32 %v546
        %v643 = vcvt.s32.f32 %v547
        %v644 = vcvt.s32.f32 %v548
        %v645 = vcvt.s32.f32 %v549
        %v646 = vcvt.s32.f32 %v550
        %v647 = vcvt.s32.f32 %v551
        %v648 = vcvt.s32.f32 %v552
        %v649 = vcvt.s32.f32 %v553
        %v650 = vcvt.s32.f32 %v554
        %v651 = vcvt.s32.f32 %v555
        %v652 = vcvt.s32.f32 %v556
        %653 = vmatprep.subr.mxu0 %v558
        %654 = vmatpush1.msra.mxu0 %v557
        %655 = vmatprep.subr.mxu0 %v564
        %656 = vmatpush1.msra.mxu0 %v563
        %657 = vmatprep.subr.mxu0 %v570
        %658 = vmatpush1.msra.mxu0 %v569
        %659 = vmatprep.subr.mxu0 %v576
        %660 = vmatpush1.msra.mxu0 %v575
        %661 = vmatprep.subr.mxu0 %v582
        %662 = vmatpush1.msra.mxu0 %v581
        %663 = vmatprep.subr.mxu0 %v588
        %664 = vmatpush1.msra.mxu0 %v587
        %665 = vmatprep.subr.mxu0 %v594
        %666 = vmatpush1.msra.mxu0 %v593
        %667 = vmatprep.subr.mxu0 %v600
        %668 = vmatpush1.msra.mxu0 %v599
        %669 = vmatprep.subr.mxu0 %v606
        %670 = vmatpush1.msra.mxu0 %v605
        %671 = vmatprep.subr.mxu0 %v612
        %672 = vmatpush1.msra.mxu0 %v611
        %673 = vmatprep.subr.mxu0 %v618
        %674 = vmatpush1.msra.mxu0 %v617
        %675 = vmatprep.subr.mxu0 %v624
        %676 = vmatpush1.msra.mxu0 %v623
        %677 = vmatprep.subr.mxu0 %v630
        %678 = vmatpush1.msra.mxu0 %v629
        %679 = vmatprep.subr.mxu0 %v636
        %680 = vmatpush1.msra.mxu0 %v635
        %681 = vmatprep.subr.mxu0 %v642
        %682 = vmatpush1.msra.mxu0 %v641
        %683 = vmatprep.subr.mxu0 %v648
        %684 = vmatpush1.msra.mxu0 %v647
        %685 = vmatprep.subr.mxu0 0.0
        %686 = vmatpush1.msra.mxu0 0.0
        %687 = vmatprep.subr.mxu0 0.0
        %688 = vmatpush1.msra.mxu0 0.0
        %689 = vmatprep.subr.mxu0 0.0
        %690 = vmatpush1.msra.mxu0 0.0
        %691 = vmatprep.subr.mxu0 0.0
        %692 = vmatpush1.msra.mxu0 0.0
        %693 = vmatprep.subr.mxu0 0.0
        %694 = vmatpush1.msra.mxu0 0.0
        %695 = vmatprep.subr.mxu0 0.0
        %696 = vmatpush1.msra.mxu0 0.0
        %697 = vmatprep.subr.mxu0 0.0
        %698 = vmatpush1.msra.mxu0 0.0
        %699 = vmatprep.subr.mxu0 0.0
        %700 = vmatpush1.msra.mxu0 0.0
        %701 = vmatprep.subr.mxu0 0.0
        %702 = vmatpush1.msra.mxu0 0.0
        %703 = vmatprep.subr.mxu0 0.0
        %704 = vmatpush1.msra.mxu0 0.0
        %705 = vmatprep.subr.mxu0 0.0
        %706 = vmatpush1.msra.mxu0 0.0
        %707 = vmatprep.subr.mxu0 0.0
        %708 = vmatpush1.msra.mxu0 0.0
        %709 = vmatprep.subr.mxu0 0.0
        %710 = vmatpush1.msra.mxu0 0.0
        %711 = vmatprep.subr.mxu0 0.0
        %712 = vmatpush1.msra.mxu0 0.0
        %713 = vmatprep.subr.mxu0 0.0
        %714 = vmatpush1.msra.mxu0 0.0
        %715 = vmatprep.subr.mxu0 0.0
        %716 = vmatpush1.msra.mxu0 0.0
        %717 = vmatprep.mubr.f32.mxu0 0.0
        %718 = vmatmul.mubr.f32.gmra.mrb[0].mxu0 %v436
        %v719 = vpop.f32.mrb[0].mxu0
        %v720 = vadd.f32 0.0, %v719
        %v721 = vpop.f32.mrb[0].mxu0
        %v722 = vadd.f32 0.0, %v721
        %723 = vdwg.mxu0
        %724 = vmatprep.subr.mxu0 %v560
        %725 = vmatpush1.msra.mxu0 %v559
        %726 = vmatprep.subr.mxu0 %v566
        %727 = vmatpush1.msra.mxu0 %v565
        %728 = vmatprep.subr.mxu0 %v572
        %729 = vmatpush1.msra.mxu0 %v571
        %730 = vmatprep.subr.mxu0 %v578
        %731 = vmatpush1.msra.mxu0 %v577
        %732 = vmatprep.subr.mxu0 %v584
        %733 = vmatpush1.msra.mxu0 %v583
        %734 = vmatprep.subr.mxu0 %v590
        %735 = vmatpush1.msra.mxu0 %v589
        %736 = vmatprep.subr.mxu0 %v596
        %737 = vmatpush1.msra.mxu0 %v595
        %738 = vmatprep.subr.mxu0 %v602
        %739 = vmatpush1.msra.mxu0 %v601
        %740 = vmatprep.subr.mxu0 %v608
        %741 = vmatpush1.msra.mxu0 %v607
        %742 = vmatprep.subr.mxu0 %v614
        %743 = vmatpush1.msra.mxu0 %v613
        %744 = vmatprep.subr.mxu0 %v620
        %745 = vmatpush1.msra.mxu0 %v619
        %746 = vmatprep.subr.mxu0 %v626
        %747 = vmatpush1.msra.mxu0 %v625
        %748 = vmatprep.subr.mxu0 %v632
        %749 = vmatpush1.msra.mxu0 %v631
        %750 = vmatprep.subr.mxu0 %v638
        %751 = vmatpush1.msra.mxu0 %v637
        %752 = vmatprep.subr.mxu0 %v644
        %753 = vmatpush1.msra.mxu0 %v643
        %754 = vmatprep.subr.mxu0 %v650
        %755 = vmatpush1.msra.mxu0 %v649
        %756 = vmatprep.subr.mxu0 0.0
        %757 = vmatpush1.msra.mxu0 0.0
        %758 = vmatprep.subr.mxu0 0.0
        %759 = vmatpush1.msra.mxu0 0.0
        %760 = vmatprep.subr.mxu0 0.0
        %761 = vmatpush1.msra.mxu0 0.0
        %762 = vmatprep.subr.mxu0 0.0
        %763 = vmatpush1.msra.mxu0 0.0
        %764 = vmatprep.subr.mxu0 0.0
        %765 = vmatpush1.msra.mxu0 0.0
        %766 = vmatprep.subr.mxu0 0.0
        %767 = vmatpush1.msra.mxu0 0.0
        %768 = vmatprep.subr.mxu0 0.0
        %769 = vmatpush1.msra.mxu0 0.0
        %770 = vmatprep.subr.mxu0 0.0
        %771 = vmatpush1.msra.mxu0 0.0
        %772 = vmatprep.subr.mxu0 0.0
        %773 = vmatpush1.msra.mxu0 0.0
        %774 = vmatprep.subr.mxu0 0.0
        %775 = vmatpush1.msra.mxu0 0.0
        %776 = vmatprep.subr.mxu0 0.0
        %777 = vmatpush1.msra.mxu0 0.0
        %778 = vmatprep.subr.mxu0 0.0
        %779 = vmatpush1.msra.mxu0 0.0
        %780 = vmatprep.subr.mxu0 0.0
        %781 = vmatpush1.msra.mxu0 0.0
        %782 = vmatprep.subr.mxu0 0.0
        %783 = vmatpush1.msra.mxu0 0.0
        %784 = vmatprep.subr.mxu0 0.0
        %785 = vmatpush1.msra.mxu0 0.0
        %786 = vmatprep.subr.mxu0 0.0
        %787 = vmatpush1.msra.mxu0 0.0
        %788 = vmatprep.mubr.f32.mxu0 0.0
        %789 = vmatmul.mubr.f32.gmra.mrb[0].mxu0 %v436
        %v790 = vpop.f32.mrb[0].mxu0
        %v791 = vadd.f32 0.0, %v790
        %v792 = vpop.f32.mrb[0].mxu0
        %v793 = vadd.f32 0.0, %v792
        %794 = vdwg.mxu0
        %795 = vmatprep.subr.mxu0 %v562
        %796 = vmatpush1.msra.mxu0 %v561
        %797 = vmatprep.subr.mxu0 %v568
        %798 = vmatpush1.msra.mxu0 %v567
        %799 = vmatprep.subr.mxu0 %v574
        %800 = vmatpush1.msra.mxu0 %v573
        %801 = vmatprep.subr.mxu0 %v580
        %802 = vmatpush1.msra.mxu0 %v579
        %803 = vmatprep.subr.mxu0 %v586
        %804 = vmatpush1.msra.mxu0 %v585
        %805 = vmatprep.subr.mxu0 %v592
        %806 = vmatpush1.msra.mxu0 %v591
        %807 = vmatprep.subr.mxu0 %v598
        %808 = vmatpush1.msra.mxu0 %v597
        %809 = vmatprep.subr.mxu0 %v604
        %810 = vmatpush1.msra.mxu0 %v603
        %811 = vmatprep.subr.mxu0 %v610
        %812 = vmatpush1.msra.mxu0 %v609
        %813 = vmatprep.subr.mxu0 %v616
        %814 = vmatpush1.msra.mxu0 %v615
        %815 = vmatprep.subr.mxu0 %v622
        %816 = vmatpush1.msra.mxu0 %v621
        %817 = vmatprep.subr.mxu0 %v628
        %818 = vmatpush1.msra.mxu0 %v627
        %819 = vmatprep.subr.mxu0 %v634
        %820 = vmatpush1.msra.mxu0 %v633
        %821 = vmatprep.subr.mxu0 %v640
        %822 = vmatpush1.msra.mxu0 %v639
        %823 = vmatprep.subr.mxu0 %v646
        %824 = vmatpush1.msra.mxu0 %v645
        %825 = vmatprep.subr.mxu0 %v652
        %826 = vmatpush1.msra.mxu0 %v651
        %827 = vmatprep.subr.mxu0 0.0
        %828 = vmatpush1.msra.mxu0 0.0
        %829 = vmatprep.subr.mxu0 0.0
        %830 = vmatpush1.msra.mxu0 0.0
        %831 = vmatprep.subr.mxu0 0.0
        %832 = vmatpush1.msra.mxu0 0.0
        %833 = vmatprep.subr.mxu0 0.0
        %834 = vmatpush1.msra.mxu0 0.0
        %835 = vmatprep.subr.mxu0 0.0
        %836 = vmatpush1.msra.mxu0 0.0
        %837 = vmatprep.subr.mxu0 0.0
        %838 = vmatpush1.msra.mxu0 0.0
        %839 = vmatprep.subr.mxu0 0.0
        %840 = vmatpush1.msra.mxu0 0.0
        %841 = vmatprep.subr.mxu0 0.0
        %842 = vmatpush1.msra.mxu0 0.0
        %843 = vmatprep.subr.mxu0 0.0
        %844 = vmatpush1.msra.mxu0 0.0
        %845 = vmatprep.subr.mxu0 0.0
        %846 = vmatpush1.msra.mxu0 0.0
        %847 = vmatprep.subr.mxu0 0.0
        %848 = vmatpush1.msra.mxu0 0.0
        %849 = vmatprep.subr.mxu0 0.0
        %850 = vmatpush1.msra.mxu0 0.0
        %851 = vmatprep.subr.mxu0 0.0
        %852 = vmatpush1.msra.mxu0 0.0
        %853 = vmatprep.subr.mxu0 0.0
        %854 = vmatpush1.msra.mxu0 0.0
        %855 = vmatprep.subr.mxu0 0.0
        %856 = vmatpush1.msra.mxu0 0.0
        %857 = vmatprep.subr.mxu0 0.0
        %858 = vmatpush1.msra.mxu0 0.0
        %859 = vmatprep.mubr.f32.mxu0 0.0
        %860 = vmatmul.mubr.f32.gmra.mrb[0].mxu0 %v436
        %v861 = vpop.f32.mrb[0].mxu0
        %v862 = vadd.f32 0.0, %v861
        %v863 = vpop.f32.mrb[0].mxu0
        %v864 = vadd.f32 0.0, %v863
        %865 = vdwg.mxu0
        %v866 = vlaneseq
        %v867 = vshrl.u32 %v866, 7
        %v868 = vsub.s32 7, %v867
        %v869 = vrot.slane %v401, %v868
        %v870 = vlaneseq
        %v871 = vshrl.u32 %v870, 7
        %v872 = vsub.s32 7, %v871
        %v873 = vrot.slane %v402, %v872
        %v874 = vlaneseq
        %v875 = vshrl.u32 %v874, 7
        %v876 = vsub.s32 7, %v875
        %v877 = vrot.slane %v403, %v876
        %v878 = vlaneseq
        %v879 = vshrl.u32 %v878, 7
        %v880 = vsub.s32 7, %v879
        %v881 = vrot.slane %v404, %v880
        %v882 = vlaneseq
        %v883 = vshrl.u32 %v882, 7
        %v884 = vsub.s32 7, %v883
        %v885 = vrot.slane %v405, %v884
        %v886 = vlaneseq
        %v887 = vshrl.u32 %v886, 7
        %v888 = vsub.s32 7, %v887
        %v889 = vrot.slane %v406, %v888
        %v890 = vmul.f32 %v720, %v869
        %v891 = vmul.f32 %v722, %v873
        %v892 = vmul.f32 %v791, %v877
        %v893 = vmul.f32 %v793, %v881
        %v894 = vmul.f32 %v862, %v885
        %v895 = vmul.f32 %v864, %v889
        %896 = vst [vmem:[#allocation2] sm:$0xff] %v890
        %897 = vst [vmem:[#allocation2 + $0x8] sm:$0xff] %v891
        %898 = vst [vmem:[#allocation2 + $0x10] sm:$0xff] %v892
        %899 = vst [vmem:[#allocation2 + $0x18] sm:$0xff] %v893
        %900 = vst [vmem:[#allocation2 + $0x20] sm:$0xff] %v894
        %901 = vst [vmem:[#allocation2 + $0x28] sm:$0xff] %v895
        %v902 = vld [vmem:[#allocation2] sm:$0xff]
        %v903 = vld [vmem:[#allocation2 + $0x10] sm:$0xff]
        %v904 = vld [vmem:[#allocation2 + $0x20] sm:$0xff]
        %905 = vmatprep.subr.mxu0 0.0
        %906 = vmatpush1.xpose.msra.mxu0 %v903
        %907 = vmatprep.subr.mxu0 0.0
        %908 = vmatpush1.xpose.msra.mxu0 0.0
        %909 = vmatprep.subr.mxu0 0.0
        %910 = vmatpush1.xpose.msra.mxu0 0.0
        %911 = vmatprep.subr.mxu0 0.0
        %912 = vmatpush1.xpose.msra.mxu0 0.0
        %913 = vmatprep.subr.mxu0 0.0
        %914 = vmatpush1.xpose.msra.mxu0 0.0
        %915 = vmatprep.subr.mxu0 0.0
        %916 = vmatpush1.xpose.msra.mxu0 0.0
        %917 = vmatprep.subr.mxu0 0.0
        %918 = vmatpush1.xpose.msra.mxu0 0.0
        %919 = vmatprep.subr.mxu0 0.0
        %920 = vmatpush1.xpose.msra.mxu0 0.0
        %921 = vmatprep.subr.mxu0 0.0
        %922 = vmatpush1.xpose.msra.mxu0 0.0
        %923 = vmatprep.subr.mxu0 0.0
        %924 = vmatpush1.xpose.msra.mxu0 0.0
        %925 = vmatprep.subr.mxu0 0.0
        %926 = vmatpush1.xpose.msra.mxu0 0.0
        %927 = vmatprep.subr.mxu0 0.0
        %928 = vmatpush1.xpose.msra.mxu0 0.0
        %929 = vmatprep.subr.mxu0 0.0
        %930 = vmatpush1.xpose.msra.mxu0 0.0
        %931 = vmatprep.subr.mxu0 0.0
        %932 = vmatpush1.xpose.msra.mxu0 0.0
        %933 = vmatprep.subr.mxu0 0.0
        %934 = vmatpush1.xpose.msra.mxu0 0.0
        %935 = vmatprep.subr.mxu0 0.0
        %936 = vmatpush1.xpose.msra.mxu0 0.0
        %937 = vmatprep.subr.mxu0 0.0
        %938 = vmatpush1.xpose.msra.mxu0 0.0
        %939 = vmatprep.subr.mxu0 0.0
        %940 = vmatpush1.xpose.msra.mxu0 0.0
        %941 = vmatprep.subr.mxu0 0.0
        %942 = vmatpush1.xpose.msra.mxu0 0.0
        %943 = vmatprep.subr.mxu0 0.0
        %944 = vmatpush1.xpose.msra.mxu0 0.0
        %945 = vmatprep.subr.mxu0 0.0
        %946 = vmatpush1.xpose.msra.mxu0 0.0
        %947 = vmatprep.subr.mxu0 0.0
        %948 = vmatpush1.xpose.msra.mxu0 0.0
        %949 = vmatprep.subr.mxu0 0.0
        %950 = vmatpush1.xpose.msra.mxu0 0.0
        %951 = vmatprep.subr.mxu0 0.0
        %952 = vmatpush1.xpose.msra.mxu0 0.0
        %953 = vmatprep.subr.mxu0 0.0
        %954 = vmatpush1.xpose.msra.mxu0 0.0
        %955 = vmatprep.subr.mxu0 0.0
        %956 = vmatpush1.xpose.msra.mxu0 0.0
        %957 = vmatprep.subr.mxu0 0.0
        %958 = vmatpush1.xpose.msra.mxu0 0.0
        %959 = vmatprep.subr.mxu0 0.0
        %960 = vmatpush1.xpose.msra.mxu0 0.0
        %961 = vmatprep.subr.mxu0 0.0
        %962 = vmatpush1.xpose.msra.mxu0 0.0
        %963 = vmatprep.subr.mxu0 0.0
        %964 = vmatpush1.xpose.msra.mxu0 0.0
        %965 = vmatprep.subr.mxu0 0.0
        %966 = vmatpush1.xpose.msra.mxu0 0.0
        %967 = vmatprep.subr.mxu0 0.0
        %968 = vmatpush1.xpose.msra.mxu0 0.0
        %969 = vmatprep.mubr.f32.mxu0 0.0
        %970 = vmatmul.mubr.f32.gmra.mrb[0].mxu0 %v902
        %v971 = vpop.f32.mrb[0].mxu0
        %v972 = vadd.f32 0.0, %v971
        %v973 = vpop.f32.mrb[0].mxu0
        %974 = vdwg.mxu0
        %v975 = vmul.f32 %v972, 0.088388346
        %v976 = vadd.f32 %v975, %v414
        %vm977 = vcmask 64512
        %v978 = vsel %vm977, %v976, -inf
        %979 = vmax.xlane.f32.xlu0 %v978
        %v980 = vpop.xlane.xlu0 %979
        %v981 = vsub.f32 %v976, %v980
        %v982 = vmul.f32 %v981, 1.442695
        %v983 = vpow.pop %v982
        %v984 = vsel %vm977, %v983, 0.0
        %985 = vadd.xlane.f32.xlu0 %v984
        %v986 = vpop.xlane.xlu0 %985
        %v987 = vrcp.pop %v986
        %v988 = vmul.f32 %v983, %v987
        %v990 = vsel %vm977, %v988, 0
        %992 = vmatprep.subr.mxu0 0.0
        %993 = vmatpush1.msra.mxu0 %v904
        %994 = vmatprep.subr.mxu0 0.0
        %995 = vmatpush1.msra.mxu0 0.0
        %996 = vmatprep.subr.mxu0 0.0
        %997 = vmatpush1.msra.mxu0 0.0
        %998 = vmatprep.subr.mxu0 0.0
        %999 = vmatpush1.msra.mxu0 0.0
        %1000 = vmatprep.subr.mxu0 0.0
        %1001 = vmatpush1.msra.mxu0 0.0
        %1002 = vmatprep.subr.mxu0 0.0
        %1003 = vmatpush1.msra.mxu0 0.0
        %1004 = vmatprep.subr.mxu0 0.0
        %1005 = vmatpush1.msra.mxu0 0.0
        %1006 = vmatprep.subr.mxu0 0.0
        %1007 = vmatpush1.msra.mxu0 0.0
        %1008 = vmatprep.subr.mxu0 0.0
        %1009 = vmatpush1.msra.mxu0 0.0
        %1010 = vmatprep.subr.mxu0 0.0
        %1011 = vmatpush1.msra.mxu0 0.0
        %1012 = vmatprep.subr.mxu0 0.0
        %1013 = vmatpush1.msra.mxu0 0.0
        %1014 = vmatprep.subr.mxu0 0.0
        %1015 = vmatpush1.msra.mxu0 0.0
        %1016 = vmatprep.subr.mxu0 0.0
        %1017 = vmatpush1.msra.mxu0 0.0
        %1018 = vmatprep.subr.mxu0 0.0
        %1019 = vmatpush1.msra.mxu0 0.0
        %1020 = vmatprep.subr.mxu0 0.0
        %1021 = vmatpush1.msra.mxu0 0.0
        %1022 = vmatprep.subr.mxu0 0.0
        %1023 = vmatpush1.msra.mxu0 0.0
        %1024 = vmatprep.subr.mxu0 0.0
        %1025 = vmatpush1.msra.mxu0 0.0
        %1026 = vmatprep.subr.mxu0 0.0
        %1027 = vmatpush1.msra.mxu0 0.0
        %1028 = vmatprep.subr.mxu0 0.0
        %1029 = vmatpush1.msra.mxu0 0.0
        %1030 = vmatprep.subr.mxu0 0.0
        %1031 = vmatpush1.msra.mxu0 0.0
        %1032 = vmatprep.subr.mxu0 0.0
        %1033 = vmatpush1.msra.mxu0 0.0
        %1034 = vmatprep.subr.mxu0 0.0
        %1035 = vmatpush1.msra.mxu0 0.0
        %1036 = vmatprep.subr.mxu0 0.0
        %1037 = vmatpush1.msra.mxu0 0.0
        %1038 = vmatprep.subr.mxu0 0.0
        %1039 = vmatpush1.msra.mxu0 0.0
        %1040 = vmatprep.subr.mxu0 0.0
        %1041 = vmatpush1.msra.mxu0 0.0
        %1042 = vmatprep.subr.mxu0 0.0
        %1043 = vmatpush1.msra.mxu0 0.0
        %1044 = vmatprep.subr.mxu0 0.0
        %1045 = vmatpush1.msra.mxu0 0.0
        %1046 = vmatprep.subr.mxu0 0.0
        %1047 = vmatpush1.msra.mxu0 0.0
        %1048 = vmatprep.subr.mxu0 0.0
        %1049 = vmatpush1.msra.mxu0 0.0
        %1050 = vmatprep.subr.mxu0 0.0
        %1051 = vmatpush1.msra.mxu0 0.0
        %1052 = vmatprep.subr.mxu0 0.0
        %1053 = vmatpush1.msra.mxu0 0.0
        %1054 = vmatprep.subr.mxu0 0.0
        %1055 = vmatpush1.msra.mxu0 0.0
        %1056 = vmatprep.mubr.f32.mxu0 0.0
        %1057 = vmatmul.mubr.f32.gmra.mrb[0].mxu0 %v990
        %v1058 = vpop.f32.mrb[0].mxu0
        %v1059 = vadd.f32 0.0, %v1058
        %v1060 = vpop.f32.mrb[0].mxu0
        %1061 = vdwg.mxu0
        %1062 = vst [vmem:[#allocation3] sm:$0xff] %v1059
        %v1063 = vld [vmem:[#allocation2 + $0x8] sm:$0xff]
        %v1064 = vld [vmem:[#allocation2 + $0x18] sm:$0xff]
        %v1065 = vld [vmem:[#allocation2 + $0x28] sm:$0xff]
        %1066 = vmatprep.subr.mxu0 0.0
        %1067 = vmatpush1.xpose.msra.mxu0 %v1064
        %1068 = vmatprep.subr.mxu0 0.0
        %1069 = vmatpush1.xpose.msra.mxu0 0.0
        %1070 = vmatprep.subr.mxu0 0.0
        %1071 = vmatpush1.xpose.msra.mxu0 0.0
        %1072 = vmatprep.subr.mxu0 0.0
        %1073 = vmatpush1.xpose.msra.mxu0 0.0
        %1074 = vmatprep.subr.mxu0 0.0
        %1075 = vmatpush1.xpose.msra.mxu0 0.0
        %1076 = vmatprep.subr.mxu0 0.0
        %1077 = vmatpush1.xpose.msra.mxu0 0.0
        %1078 = vmatprep.subr.mxu0 0.0
        %1079 = vmatpush1.xpose.msra.mxu0 0.0
        %1080 = vmatprep.subr.mxu0 0.0
        %1081 = vmatpush1.xpose.msra.mxu0 0.0
        %1082 = vmatprep.subr.mxu0 0.0
        %1083 = vmatpush1.xpose.msra.mxu0 0.0
        %1084 = vmatprep.subr.mxu0 0.0
        %1085 = vmatpush1.xpose.msra.mxu0 0.0
        %1086 = vmatprep.subr.mxu0 0.0
        %1087 = vmatpush1.xpose.msra.mxu0 0.0
        %1088 = vmatprep.subr.mxu0 0.0
        %1089 = vmatpush1.xpose.msra.mxu0 0.0
        %1090 = vmatprep.subr.mxu0 0.0
        %1091 = vmatpush1.xpose.msra.mxu0 0.0
        %1092 = vmatprep.subr.mxu0 0.0
        %1093 = vmatpush1.xpose.msra.mxu0 0.0
        %1094 = vmatprep.subr.mxu0 0.0
        %1095 = vmatpush1.xpose.msra.mxu0 0.0
        %1096 = vmatprep.subr.mxu0 0.0
        %1097 = vmatpush1.xpose.msra.mxu0 0.0
        %1098 = vmatprep.subr.mxu0 0.0
        %1099 = vmatpush1.xpose.msra.mxu0 0.0
        %1100 = vmatprep.subr.mxu0 0.0
        %1101 = vmatpush1.xpose.msra.mxu0 0.0
        %1102 = vmatprep.subr.mxu0 0.0
        %1103 = vmatpush1.xpose.msra.mxu0 0.0
        %1104 = vmatprep.subr.mxu0 0.0
        %1105 = vmatpush1.xpose.msra.mxu0 0.0
        %1106 = vmatprep.subr.mxu0 0.0
        %1107 = vmatpush1.xpose.msra.mxu0 0.0
        %1108 = vmatprep.subr.mxu0 0.0
        %1109 = vmatpush1.xpose.msra.mxu0 0.0
        %1110 = vmatprep.subr.mxu0 0.0
        %1111 = vmatpush1.xpose.msra.mxu0 0.0
        %1112 = vmatprep.subr.mxu0 0.0
        %1113 = vmatpush1.xpose.msra.mxu0 0.0
        %1114 = vmatprep.subr.mxu0 0.0
        %1115 = vmatpush1.xpose.msra.mxu0 0.0
        %1116 = vmatprep.subr.mxu0 0.0
        %1117 = vmatpush1.xpose.msra.mxu0 0.0
        %1118 = vmatprep.subr.mxu0 0.0
        %1119 = vmatpush1.xpose.msra.mxu0 0.0
        %1120 = vmatprep.subr.mxu0 0.0
        %1121 = vmatpush1.xpose.msra.mxu0 0.0
        %1122 = vmatprep.subr.mxu0 0.0
        %1123 = vmatpush1.xpose.msra.mxu0 0.0
        %1124 = vmatprep.subr.mxu0 0.0
        %1125 = vmatpush1.xpose.msra.mxu0 0.0
        %1126 = vmatprep.subr.mxu0 0.0
        %1127 = vmatpush1.xpose.msra.mxu0 0.0
        %1128 = vmatprep.subr.mxu0 0.0
        %1129 = vmatpush1.xpose.msra.mxu0 0.0
        %1130 = vmatprep.mubr.f32.mxu0 0.0
        %1131 = vmatmul.mubr.f32.gmra.mrb[0].mxu0 %v1063
        %v1132 = vpop.f32.mrb[0].mxu0
        %v1133 = vadd.f32 0.0, %v1132
        %v1134 = vpop.f32.mrb[0].mxu0
        %1135 = vdwg.mxu0
        %v1136 = vmul.f32 %v1133, 0.088388346
        %v1137 = vadd.f32 %v1136, %v414
        %v1138 = vsel %vm977, %v1137, -inf
        %1139 = vmax.xlane.f32.xlu0 %v1138
        %v1140 = vpop.xlane.xlu0 %1139
        %v1141 = vsub.f32 %v1137, %v1140
        %v1142 = vmul.f32 %v1141, 1.442695
        %v1143 = vpow.pop %v1142
        %v1144 = vsel %vm977, %v1143, 0.0
        %1145 = vadd.xlane.f32.xlu0 %v1144
        %v1146 = vpop.xlane.xlu0 %1145
        %v1147 = vrcp.pop %v1146
        %v1148 = vmul.f32 %v1143, %v1147
        %v1150 = vsel %vm977, %v1148, 0
        %1152 = vmatprep.subr.mxu0 0.0
        %1153 = vmatpush1.msra.mxu0 %v1065
        %1154 = vmatprep.subr.mxu0 0.0
        %1155 = vmatpush1.msra.mxu0 0.0
        %1156 = vmatprep.subr.mxu0 0.0
        %1157 = vmatpush1.msra.mxu0 0.0
        %1158 = vmatprep.subr.mxu0 0.0
        %1159 = vmatpush1.msra.mxu0 0.0
        %1160 = vmatprep.subr.mxu0 0.0
        %1161 = vmatpush1.msra.mxu0 0.0
        %1162 = vmatprep.subr.mxu0 0.0
        %1163 = vmatpush1.msra.mxu0 0.0
        %1164 = vmatprep.subr.mxu0 0.0
        %1165 = vmatpush1.msra.mxu0 0.0
        %1166 = vmatprep.subr.mxu0 0.0
        %1167 = vmatpush1.msra.mxu0 0.0
        %1168 = vmatprep.subr.mxu0 0.0
        %1169 = vmatpush1.msra.mxu0 0.0
        %1170 = vmatprep.subr.mxu0 0.0
        %1171 = vmatpush1.msra.mxu0 0.0
        %1172 = vmatprep.subr.mxu0 0.0
        %1173 = vmatpush1.msra.mxu0 0.0
        %1174 = vmatprep.subr.mxu0 0.0
        %1175 = vmatpush1.msra.mxu0 0.0
        %1176 = vmatprep.subr.mxu0 0.0
        %1177 = vmatpush1.msra.mxu0 0.0
        %1178 = vmatprep.subr.mxu0 0.0
        %1179 = vmatpush1.msra.mxu0 0.0
        %1180 = vmatprep.subr.mxu0 0.0
        %1181 = vmatpush1.msra.mxu0 0.0
        %1182 = vmatprep.subr.mxu0 0.0
        %1183 = vmatpush1.msra.mxu0 0.0
        %1184 = vmatprep.subr.mxu0 0.0
        %1185 = vmatpush1.msra.mxu0 0.0
        %1186 = vmatprep.subr.mxu0 0.0
        %1187 = vmatpush1.msra.mxu0 0.0
        %1188 = vmatprep.subr.mxu0 0.0
        %1189 = vmatpush1.msra.mxu0 0.0
        %1190 = vmatprep.subr.mxu0 0.0
        %1191 = vmatpush1.msra.mxu0 0.0
        %1192 = vmatprep.subr.mxu0 0.0
        %1193 = vmatpush1.msra.mxu0 0.0
        %1194 = vmatprep.subr.mxu0 0.0
        %1195 = vmatpush1.msra.mxu0 0.0
        %1196 = vmatprep.subr.mxu0 0.0
        %1197 = vmatpush1.msra.mxu0 0.0
        %1198 = vmatprep.subr.mxu0 0.0
        %1199 = vmatpush1.msra.mxu0 0.0
        %1200 = vmatprep.subr.mxu0 0.0
        %1201 = vmatpush1.msra.mxu0 0.0
        %1202 = vmatprep.subr.mxu0 0.0
        %1203 = vmatpush1.msra.mxu0 0.0
        %1204 = vmatprep.subr.mxu0 0.0
        %1205 = vmatpush1.msra.mxu0 0.0
        %1206 = vmatprep.subr.mxu0 0.0
        %1207 = vmatpush1.msra.mxu0 0.0
        %1208 = vmatprep.subr.mxu0 0.0
        %1209 = vmatpush1.msra.mxu0 0.0
        %1210 = vmatprep.subr.mxu0 0.0
        %1211 = vmatpush1.msra.mxu0 0.0
        %1212 = vmatprep.subr.mxu0 0.0
        %1213 = vmatpush1.msra.mxu0 0.0
        %1214 = vmatprep.subr.mxu0 0.0
        %1215 = vmatpush1.msra.mxu0 0.0
        %1216 = vmatprep.mubr.f32.mxu0 0.0
        %1217 = vmatmul.mubr.f32.gmra.mrb[0].mxu0 %v1150
        %v1218 = vpop.f32.mrb[0].mxu0
        %v1219 = vadd.f32 0.0, %v1218
        %v1220 = vpop.f32.mrb[0].mxu0
        %1221 = vdwg.mxu0
        %1222 = vst [vmem:[#allocation3 + $0x8] sm:$0xff] %v1219
        %v1223 = vld [vmem:[#allocation3] sm:$0xff]
        %v1224 = vld [vmem:[#allocation3 + $0x8] sm:$0xff]
        %v1225 = vld [vmem:[%s327] sm:$0xff]
        %v1226 = vld [vmem:[%s327 + $0x8] sm:$0xff]
        %v1227 = vld [vmem:[%s327 + $0x10] sm:$0xff]
        %v1228 = vld [vmem:[%s327 + $0x18] sm:$0xff]
        %v1229 = vld [vmem:[%s327 + $0x20] sm:$0xff]
        %v1230 = vld [vmem:[%s327 + $0x28] sm:$0xff]
        %v1231 = vld [vmem:[%s327 + $0x30] sm:$0xff]
        %v1232 = vld [vmem:[%s327 + $0x38] sm:$0xff]
        %v1233 = vunpack.c.0.s8 %v1225
        %v1234 = vunpack.c.1.s8 %v1225
        %v1235 = vunpack.c.2.s8 %v1225
        %v1236 = vunpack.c.3.s8 %v1225
        %v1237 = vunpack.c.0.s8 %v1226
        %v1238 = vunpack.c.1.s8 %v1226
        %v1239 = vunpack.c.2.s8 %v1226
        %v1240 = vunpack.c.3.s8 %v1226
        %v1241 = vunpack.c.0.s8 %v1227
        %v1242 = vunpack.c.1.s8 %v1227
        %v1243 = vunpack.c.2.s8 %v1227
        %v1244 = vunpack.c.3.s8 %v1227
        %v1245 = vunpack.c.0.s8 %v1228
        %v1246 = vunpack.c.1.s8 %v1228
        %v1247 = vunpack.c.2.s8 %v1228
        %v1248 = vunpack.c.3.s8 %v1228
        %v1249 = vunpack.c.0.s8 %v1229
        %v1250 = vunpack.c.1.s8 %v1229
        %v1251 = vunpack.c.2.s8 %v1229
        %v1252 = vunpack.c.3.s8 %v1229
        %v1253 = vunpack.c.0.s8 %v1230
        %v1254 = vunpack.c.1.s8 %v1230
        %v1255 = vunpack.c.2.s8 %v1230
        %v1256 = vunpack.c.3.s8 %v1230
        %v1257 = vunpack.c.0.s8 %v1231
        %v1258 = vunpack.c.1.s8 %v1231
        %v1259 = vunpack.c.2.s8 %v1231
        %v1260 = vunpack.c.3.s8 %v1231
        %v1261 = vunpack.c.0.s8 %v1232
        %v1262 = vunpack.c.1.s8 %v1232
        %v1263 = vunpack.c.2.s8 %v1232
        %v1264 = vunpack.c.3.s8 %v1232
        %v1265 = vcvt.s32.f32 %v1233
        %v1266 = vcvt.s32.f32 %v1234
        %v1267 = vcvt.s32.f32 %v1235
        %v1268 = vcvt.s32.f32 %v1236
        %v1269 = vcvt.s32.f32 %v1237
        %v1270 = vcvt.s32.f32 %v1238
        %v1271 = vcvt.s32.f32 %v1239
        %v1272 = vcvt.s32.f32 %v1240
        %v1273 = vcvt.s32.f32 %v1241
        %v1274 = vcvt.s32.f32 %v1242
        %v1275 = vcvt.s32.f32 %v1243
        %v1276 = vcvt.s32.f32 %v1244
        %v1277 = vcvt.s32.f32 %v1245
        %v1278 = vcvt.s32.f32 %v1246
        %v1279 = vcvt.s32.f32 %v1247
        %v1280 = vcvt.s32.f32 %v1248
        %v1281 = vcvt.s32.f32 %v1249
        %v1282 = vcvt.s32.f32 %v1250
        %v1283 = vcvt.s32.f32 %v1251
        %v1284 = vcvt.s32.f32 %v1252
        %v1285 = vcvt.s32.f32 %v1253
        %v1286 = vcvt.s32.f32 %v1254
        %v1287 = vcvt.s32.f32 %v1255
        %v1288 = vcvt.s32.f32 %v1256
        %v1289 = vcvt.s32.f32 %v1257
        %v1290 = vcvt.s32.f32 %v1258
        %v1291 = vcvt.s32.f32 %v1259
        %v1292 = vcvt.s32.f32 %v1260
        %v1293 = vcvt.s32.f32 %v1261
        %v1294 = vcvt.s32.f32 %v1262
        %v1295 = vcvt.s32.f32 %v1263
        %v1296 = vcvt.s32.f32 %v1264
        %1297 = vmatprep.subr.mxu0 0.0
        %1298 = vmatpush1.msra.mxu0 %v1265
        %1299 = vmatprep.subr.mxu0 0.0
        %1300 = vmatpush1.msra.mxu0 %v1266
        %1301 = vmatprep.subr.mxu0 0.0
        %1302 = vmatpush1.msra.mxu0 %v1267
        %1303 = vmatprep.subr.mxu0 0.0
        %1304 = vmatpush1.msra.mxu0 %v1268
        %1305 = vmatprep.subr.mxu0 0.0
        %1306 = vmatpush1.msra.mxu0 %v1269
        %1307 = vmatprep.subr.mxu0 0.0
        %1308 = vmatpush1.msra.mxu0 %v1270
        %1309 = vmatprep.subr.mxu0 0.0
        %1310 = vmatpush1.msra.mxu0 %v1271
        %1311 = vmatprep.subr.mxu0 0.0
        %1312 = vmatpush1.msra.mxu0 %v1272
        %1313 = vmatprep.subr.mxu0 0.0
        %1314 = vmatpush1.msra.mxu0 %v1273
        %1315 = vmatprep.subr.mxu0 0.0
        %1316 = vmatpush1.msra.mxu0 %v1274
        %1317 = vmatprep.subr.mxu0 0.0
        %1318 = vmatpush1.msra.mxu0 %v1275
        %1319 = vmatprep.subr.mxu0 0.0
        %1320 = vmatpush1.msra.mxu0 %v1276
        %1321 = vmatprep.subr.mxu0 0.0
        %1322 = vmatpush1.msra.mxu0 %v1277
        %1323 = vmatprep.subr.mxu0 0.0
        %1324 = vmatpush1.msra.mxu0 %v1278
        %1325 = vmatprep.subr.mxu0 0.0
        %1326 = vmatpush1.msra.mxu0 %v1279
        %1327 = vmatprep.subr.mxu0 0.0
        %1328 = vmatpush1.msra.mxu0 %v1280
        %1329 = vmatprep.subr.mxu0 0.0
        %1330 = vmatpush1.msra.mxu0 %v1281
        %1331 = vmatprep.subr.mxu0 0.0
        %1332 = vmatpush1.msra.mxu0 %v1282
        %1333 = vmatprep.subr.mxu0 0.0
        %1334 = vmatpush1.msra.mxu0 %v1283
        %1335 = vmatprep.subr.mxu0 0.0
        %1336 = vmatpush1.msra.mxu0 %v1284
        %1337 = vmatprep.subr.mxu0 0.0
        %1338 = vmatpush1.msra.mxu0 %v1285
        %1339 = vmatprep.subr.mxu0 0.0
        %1340 = vmatpush1.msra.mxu0 %v1286
        %1341 = vmatprep.subr.mxu0 0.0
        %1342 = vmatpush1.msra.mxu0 %v1287
        %1343 = vmatprep.subr.mxu0 0.0
        %1344 = vmatpush1.msra.mxu0 %v1288
        %1345 = vmatprep.subr.mxu0 0.0
        %1346 = vmatpush1.msra.mxu0 %v1289
        %1347 = vmatprep.subr.mxu0 0.0
        %1348 = vmatpush1.msra.mxu0 %v1290
        %1349 = vmatprep.subr.mxu0 0.0
        %1350 = vmatpush1.msra.mxu0 %v1291
        %1351 = vmatprep.subr.mxu0 0.0
        %1352 = vmatpush1.msra.mxu0 %v1292
        %1353 = vmatprep.subr.mxu0 0.0
        %1354 = vmatpush1.msra.mxu0 %v1293
        %1355 = vmatprep.subr.mxu0 0.0
        %1356 = vmatpush1.msra.mxu0 %v1294
        %1357 = vmatprep.subr.mxu0 0.0
        %1358 = vmatpush1.msra.mxu0 %v1295
        %1359 = vmatprep.subr.mxu0 0.0
        %1360 = vmatpush1.msra.mxu0 %v1296
        %1361 = vmatprep.mubr.f32.mxu0 %v1224
        %1362 = vmatmul.mubr.f32.gmra.mrb[0].mxu0 %v1223
        %v1363 = vpop.f32.mrb[0].mxu0
        %v1364 = vadd.f32 0.0, %v1363
        %v1365 = vpop.f32.mrb[0].mxu0
        %1366 = vdwg.mxu0
        %v1367 = vlaneseq
        %v1368 = vshrl.u32 %v1367, 7
        %v1369 = vsub.s32 0, %v1368
        %v1370 = vrot.slane %v407, %v1369
        %v1371 = vmul.f32 %v1364, %v1370
        %v1372 = vlaneseq
        %v1373 = vshrl.u32 %v1372, 7
        %v1374 = vsub.s32 2, %v1373
        %v1375 = vrot.slane %v401, %v1374
        %v1376 = vadd.f32 %v1371, %v1375
        %v1377 = vadd.f32 %v1376, %v400
        %1378 = vadd.xlane.f32.xlu0 %v1377
        %v1379 = vpop.xlane.xlu0 %1378
        %v1380 = vmul.f32 %v1379, %v417
        %v1381 = vsub.f32 %v1377, %v1380
        %v1382 = vmul.f32 %v1381, %v1381
        %1383 = vadd.xlane.f32.xlu0 %v1382
        %v1384 = vpop.xlane.xlu0 %1383
        %v1385 = vmul.f32 %v1384, %v417
        %v1386 = vadd.f32 %v1385, 1e-05
        %v1387 = vrsqrt.pop %v1386
        %v1388 = vmul.f32 %v1381, %v1387
        %v1389 = vlaneseq
        %v1390 = vshrl.u32 %v1389, 7
        %v1391 = vsub.s32 3, %v1390
        %v1392 = vrot.slane %v401, %v1391
        %v1393 = vmul.f32 %v1388, %v1392
        %v1394 = vlaneseq
        %v1395 = vshrl.u32 %v1394, 7
        %v1396 = vsub.s32 4, %v1395
        %v1397 = vrot.slane %v401, %v1396
        %v1398 = vadd.f32 %v1393, %v1397
        %v1399 = vld [vmem:[%s393] sm:$0xff]
        %v1400 = vld [vmem:[%s393 + $0x8] sm:$0xff]
        %v1401 = vld [vmem:[%s393 + $0x10] sm:$0xff]
        %v1402 = vld [vmem:[%s393 + $0x18] sm:$0xff]
        %v1403 = vld [vmem:[%s393 + $0x20] sm:$0xff]
        %v1404 = vld [vmem:[%s393 + $0x28] sm:$0xff]
        %v1405 = vld [vmem:[%s393 + $0x30] sm:$0xff]
        %v1406 = vld [vmem:[%s393 + $0x38] sm:$0xff]
        %v1407 = vld [vmem:[%s393 + $0x40] sm:$0xff]
        %v1408 = vld [vmem:[%s393 + $0x48] sm:$0xff]
        %v1409 = vld [vmem:[%s393 + $0x50] sm:$0xff]
        %v1410 = vld [vmem:[%s393 + $0x58] sm:$0xff]
        %v1411 = vld [vmem:[%s393 + $0x60] sm:$0xff]
        %v1412 = vld [vmem:[%s393 + $0x68] sm:$0xff]
        %v1413 = vld [vmem:[%s393 + $0x70] sm:$0xff]
        %v1414 = vld [vmem:[%s393 + $0x78] sm:$0xff]
        %v1415 = vunpack.c.0.s8 %v1399
        %v1416 = vunpack.c.0.s8 %v1400
        %v1417 = vunpack.c.0.s8 %v1401
        %v1418 = vunpack.c.0.s8 %v1402
        %v1419 = vunpack.c.1.s8 %v1399
        %v1420 = vunpack.c.1.s8 %v1400
        %v1421 = vunpack.c.1.s8 %v1401
        %v1422 = vunpack.c.1.s8 %v1402
        %v1423 = vunpack.c.2.s8 %v1399
        %v1424 = vunpack.c.2.s8 %v1400
        %v1425 = vunpack.c.2.s8 %v1401
        %v1426 = vunpack.c.2.s8 %v1402
        %v1427 = vunpack.c.3.s8 %v1399
        %v1428 = vunpack.c.3.s8 %v1400
        %v1429 = vunpack.c.3.s8 %v1401
        %v1430 = vunpack.c.3.s8 %v1402
        %v1431 = vunpack.c.0.s8 %v1403
        %v1432 = vunpack.c.0.s8 %v1404
        %v1433 = vunpack.c.0.s8 %v1405
        %v1434 = vunpack.c.0.s8 %v1406
        %v1435 = vunpack.c.1.s8 %v1403
        %v1436 = vunpack.c.1.s8 %v1404
        %v1437 = vunpack.c.1.s8 %v1405
        %v1438 = vunpack.c.1.s8 %v1406
        %v1439 = vunpack.c.2.s8 %v1403
        %v1440 = vunpack.c.2.s8 %v1404
        %v1441 = vunpack.c.2.s8 %v1405
        %v1442 = vunpack.c.2.s8 %v1406
        %v1443 = vunpack.c.3.s8 %v1403
        %v1444 = vunpack.c.3.s8 %v1404
        %v1445 = vunpack.c.3.s8 %v1405
        %v1446 = vunpack.c.3.s8 %v1406
        %v1447 = vunpack.c.0.s8 %v1407
        %v1448 = vunpack.c.0.s8 %v1408
        %v1449 = vunpack.c.0.s8 %v1409
        %v1450 = vunpack.c.0.s8 %v1410
        %v1451 = vunpack.c.1.s8 %v1407
        %v1452 = vunpack.c.1.s8 %v1408
        %v1453 = vunpack.c.1.s8 %v1409
        %v1454 = vunpack.c.1.s8 %v1410
        %v1455 = vunpack.c.2.s8 %v1407
        %v1456 = vunpack.c.2.s8 %v1408
        %v1457 = vunpack.c.2.s8 %v1409
        %v1458 = vunpack.c.2.s8 %v1410
        %v1459 = vunpack.c.3.s8 %v1407
        %v1460 = vunpack.c.3.s8 %v1408
        %v1461 = vunpack.c.3.s8 %v1409
        %v1462 = vunpack.c.3.s8 %v1410
        %v1463 = vunpack.c.0.s8 %v1411
        %v1464 = vunpack.c.0.s8 %v1412
        %v1465 = vunpack.c.0.s8 %v1413
        %v1466 = vunpack.c.0.s8 %v1414
        %v1467 = vunpack.c.1.s8 %v1411
        %v1468 = vunpack.c.1.s8 %v1412
        %v1469 = vunpack.c.1.s8 %v1413
        %v1470 = vunpack.c.1.s8 %v1414
        %v1471 = vunpack.c.2.s8 %v1411
        %v1472 = vunpack.c.2.s8 %v1412
        %v1473 = vunpack.c.2.s8 %v1413
        %v1474 = vunpack.c.2.s8 %v1414
        %v1475 = vunpack.c.3.s8 %v1411
        %v1476 = vunpack.c.3.s8 %v1412
        %v1477 = vunpack.c.3.s8 %v1413
        %v1478 = vunpack.c.3.s8 %v1414
        %v1479 = vcvt.s32.f32 %v1415
        %v1480 = vcvt.s32.f32 %v1416
        %v1481 = vcvt.s32.f32 %v1417
        %v1482 = vcvt.s32.f32 %v1418
        %v1483 = vcvt.s32.f32 %v1419
        %v1484 = vcvt.s32.f32 %v1420
        %v1485 = vcvt.s32.f32 %v1421
        %v1486 = vcvt.s32.f32 %v1422
        %v1487 = vcvt.s32.f32 %v1423
        %v1488 = vcvt.s32.f32 %v1424
        %v1489 = vcvt.s32.f32 %v1425
        %v1490 = vcvt.s32.f32 %v1426
        %v1491 = vcvt.s32.f32 %v1427
        %v1492 = vcvt.s32.f32 %v1428
        %v1493 = vcvt.s32.f32 %v1429
        %v1494 = vcvt.s32.f32 %v1430
        %v1495 = vcvt.s32.f32 %v1431
        %v1496 = vcvt.s32.f32 %v1432
        %v1497 = vcvt.s32.f32 %v1433
        %v1498 = vcvt.s32.f32 %v1434
        %v1499 = vcvt.s32.f32 %v1435
        %v1500 = vcvt.s32.f32 %v1436
        %v1501 = vcvt.s32.f32 %v1437
        %v1502 = vcvt.s32.f32 %v1438
        %v1503 = vcvt.s32.f32 %v1439
        %v1504 = vcvt.s32.f32 %v1440
        %v1505 = vcvt.s32.f32 %v1441
        %v1506 = vcvt.s32.f32 %v1442
        %v1507 = vcvt.s32.f32 %v1443
        %v1508 = vcvt.s32.f32 %v1444
        %v1509 = vcvt.s32.f32 %v1445
        %v1510 = vcvt.s32.f32 %v1446
        %v1511 = vcvt.s32.f32 %v1447
        %v1512 = vcvt.s32.f32 %v1448
        %v1513 = vcvt.s32.f32 %v1449
        %v1514 = vcvt.s32.f32 %v1450
        %v1515 = vcvt.s32.f32 %v1451
        %v1516 = vcvt.s32.f32 %v1452
        %v1517 = vcvt.s32.f32 %v1453
        %v1518 = vcvt.s32.f32 %v1454
        %v1519 = vcvt.s32.f32 %v1455
        %v1520 = vcvt.s32.f32 %v1456
        %v1521 = vcvt.s32.f32 %v1457
        %v1522 = vcvt.s32.f32 %v1458
        %v1523 = vcvt.s32.f32 %v1459
        %v1524 = vcvt.s32.f32 %v1460
        %v1525 = vcvt.s32.f32 %v1461
        %v1526 = vcvt.s32.f32 %v1462
        %v1527 = vcvt.s32.f32 %v1463
        %v1528 = vcvt.s32.f32 %v1464
        %v1529 = vcvt.s32.f32 %v1465
        %v1530 = vcvt.s32.f32 %v1466
        %v1531 = vcvt.s32.f32 %v1467
        %v1532 = vcvt.s32.f32 %v1468
        %v1533 = vcvt.s32.f32 %v1469
        %v1534 = vcvt.s32.f32 %v1470
        %v1535 = vcvt.s32.f32 %v1471
        %v1536 = vcvt.s32.f32 %v1472
        %v1537 = vcvt.s32.f32 %v1473
        %v1538 = vcvt.s32.f32 %v1474
        %v1539 = vcvt.s32.f32 %v1475
        %v1540 = vcvt.s32.f32 %v1476
        %v1541 = vcvt.s32.f32 %v1477
        %v1542 = vcvt.s32.f32 %v1478
        %1543 = vmatprep.subr.mxu0 %v1480
        %1544 = vmatpush1.msra.mxu0 %v1479
        %1545 = vmatprep.subr.mxu0 %v1484
        %1546 = vmatpush1.msra.mxu0 %v1483
        %1547 = vmatprep.subr.mxu0 %v1488
        %1548 = vmatpush1.msra.mxu0 %v1487
        %1549 = vmatprep.subr.mxu0 %v1492
        %1550 = vmatpush1.msra.mxu0 %v1491
        %1551 = vmatprep.subr.mxu0 %v1496
        %1552 = vmatpush1.msra.mxu0 %v1495
        %1553 = vmatprep.subr.mxu0 %v1500
        %1554 = vmatpush1.msra.mxu0 %v1499
        %1555 = vmatprep.subr.mxu0 %v1504
        %1556 = vmatpush1.msra.mxu0 %v1503
        %1557 = vmatprep.subr.mxu0 %v1508
        %1558 = vmatpush1.msra.mxu0 %v1507
        %1559 = vmatprep.subr.mxu0 %v1512
        %1560 = vmatpush1.msra.mxu0 %v1511
        %1561 = vmatprep.subr.mxu0 %v1516
        %1562 = vmatpush1.msra.mxu0 %v1515
        %1563 = vmatprep.subr.mxu0 %v1520
        %1564 = vmatpush1.msra.mxu0 %v1519
        %1565 = vmatprep.subr.mxu0 %v1524
        %1566 = vmatpush1.msra.mxu0 %v1523
        %1567 = vmatprep.subr.mxu0 %v1528
        %1568 = vmatpush1.msra.mxu0 %v1527
        %1569 = vmatprep.subr.mxu0 %v1532
        %1570 = vmatpush1.msra.mxu0 %v1531
        %1571 = vmatprep.subr.mxu0 %v1536
        %1572 = vmatpush1.msra.mxu0 %v1535
        %1573 = vmatprep.subr.mxu0 %v1540
        %1574 = vmatpush1.msra.mxu0 %v1539
        %1575 = vmatprep.subr.mxu0 0.0
        %1576 = vmatpush1.msra.mxu0 0.0
        %1577 = vmatprep.subr.mxu0 0.0
        %1578 = vmatpush1.msra.mxu0 0.0
        %1579 = vmatprep.subr.mxu0 0.0
        %1580 = vmatpush1.msra.mxu0 0.0
        %1581 = vmatprep.subr.mxu0 0.0
        %1582 = vmatpush1.msra.mxu0 0.0
        %1583 = vmatprep.subr.mxu0 0.0
        %1584 = vmatpush1.msra.mxu0 0.0
        %1585 = vmatprep.subr.mxu0 0.0
        %1586 = vmatpush1.msra.mxu0 0.0
        %1587 = vmatprep.subr.mxu0 0.0
        %1588 = vmatpush1.msra.mxu0 0.0
        %1589 = vmatprep.subr.mxu0 0.0
        %1590 = vmatpush1.msra.mxu0 0.0
        %1591 = vmatprep.subr.mxu0 0.0
        %1592 = vmatpush1.msra.mxu0 0.0
        %1593 = vmatprep.subr.mxu0 0.0
        %1594 = vmatpush1.msra.mxu0 0.0
        %1595 = vmatprep.subr.mxu0 0.0
        %1596 = vmatpush1.msra.mxu0 0.0
        %1597 = vmatprep.subr.mxu0 0.0
        %1598 = vmatpush1.msra.mxu0 0.0
        %1599 = vmatprep.subr.mxu0 0.0
        %1600 = vmatpush1.msra.mxu0 0.0
        %1601 = vmatprep.subr.mxu0 0.0
        %1602 = vmatpush1.msra.mxu0 0.0
        %1603 = vmatprep.subr.mxu0 0.0
        %1604 = vmatpush1.msra.mxu0 0.0
        %1605 = vmatprep.subr.mxu0 0.0
        %1606 = vmatpush1.msra.mxu0 0.0
        %1607 = vmatprep.mubr.f32.mxu0 0.0
        %1608 = vmatmul.mubr.f32.gmra.mrb[0].mxu0 %v1398
        %v1609 = vpop.f32.mrb[0].mxu0
        %v1610 = vadd.f32 0.0, %v1609
        %v1611 = vpop.f32.mrb[0].mxu0
        %v1612 = vadd.f32 0.0, %v1611
        %1613 = vdwg.mxu0
        %1614 = vmatprep.subr.mxu0 %v1482
        %1615 = vmatpush1.msra.mxu0 %v1481
        %1616 = vmatprep.subr.mxu0 %v1486
        %1617 = vmatpush1.msra.mxu0 %v1485
        %1618 = vmatprep.subr.mxu0 %v1490
        %1619 = vmatpush1.msra.mxu0 %v1489
        %1620 = vmatprep.subr.mxu0 %v1494
        %1621 = vmatpush1.msra.mxu0 %v1493
        %1622 = vmatprep.subr.mxu0 %v1498
        %1623 = vmatpush1.msra.mxu0 %v1497
        %1624 = vmatprep.subr.mxu0 %v1502
        %1625 = vmatpush1.msra.mxu0 %v1501
        %1626 = vmatprep.subr.mxu0 %v1506
        %1627 = vmatpush1.msra.mxu0 %v1505
        %1628 = vmatprep.subr.mxu0 %v1510
        %1629 = vmatpush1.msra.mxu0 %v1509
        %1630 = vmatprep.subr.mxu0 %v1514
        %1631 = vmatpush1.msra.mxu0 %v1513
        %1632 = vmatprep.subr.mxu0 %v1518
        %1633 = vmatpush1.msra.mxu0 %v1517
        %1634 = vmatprep.subr.mxu0 %v1522
        %1635 = vmatpush1.msra.mxu0 %v1521
        %1636 = vmatprep.subr.mxu0 %v1526
        %1637 = vmatpush1.msra.mxu0 %v1525
        %1638 = vmatprep.subr.mxu0 %v1530
        %1639 = vmatpush1.msra.mxu0 %v1529
        %1640 = vmatprep.subr.mxu0 %v1534
        %1641 = vmatpush1.msra.mxu0 %v1533
        %1642 = vmatprep.subr.mxu0 %v1538
        %1643 = vmatpush1.msra.mxu0 %v1537
        %1644 = vmatprep.subr.mxu0 %v1542
        %1645 = vmatpush1.msra.mxu0 %v1541
        %1646 = vmatprep.subr.mxu0 0.0
        %1647 = vmatpush1.msra.mxu0 0.0
        %1648 = vmatprep.subr.mxu0 0.0
        %1649 = vmatpush1.msra.mxu0 0.0
        %1650 = vmatprep.subr.mxu0 0.0
        %1651 = vmatpush1.msra.mxu0 0.0
        %1652 = vmatprep.subr.mxu0 0.0
        %1653 = vmatpush1.msra.mxu0 0.0
        %1654 = vmatprep.subr.mxu0 0.0
        %1655 = vmatpush1.msra.mxu0 0.0
        %1656 = vmatprep.subr.mxu0 0.0
        %1657 = vmatpush1.msra.mxu0 0.0
        %1658 = vmatprep.subr.mxu0 0.0
        %1659 = vmatpush1.msra.mxu0 0.0
        %1660 = vmatprep.subr.mxu0 0.0
        %1661 = vmatpush1.msra.mxu0 0.0
        %1662 = vmatprep.subr.mxu0 0.0
        %1663 = vmatpush1.msra.mxu0 0.0
        %1664 = vmatprep.subr.mxu0 0.0
        %1665 = vmatpush1.msra.mxu0 0.0
        %1666 = vmatprep.subr.mxu0 0.0
        %1667 = vmatpush1.msra.mxu0 0.0
        %1668 = vmatprep.subr.mxu0 0.0
        %1669 = vmatpush1.msra.mxu0 0.0
        %1670 = vmatprep.subr.mxu0 0.0
        %1671 = vmatpush1.msra.mxu0 0.0
        %1672 = vmatprep.subr.mxu0 0.0
        %1673 = vmatpush1.msra.mxu0 0.0
        %1674 = vmatprep.subr.mxu0 0.0
        %1675 = vmatpush1.msra.mxu0 0.0
        %1676 = vmatprep.subr.mxu0 0.0
        %1677 = vmatpush1.msra.mxu0 0.0
        %1678 = vmatprep.mubr.f32.mxu0 0.0
        %1679 = vmatmul.mubr.f32.gmra.mrb[0].mxu0 %v1398
        %v1680 = vpop.f32.mrb[0].mxu0
        %v1681 = vadd.f32 0.0, %v1680
        %v1682 = vpop.f32.mrb[0].mxu0
        %v1683 = vadd.f32 0.0, %v1682
        %1684 = vdwg.mxu0
        %v1685 = vlaneseq
        %v1686 = vshrl.u32 %v1685, 7
        %v1687 = vsub.s32 1, %v1686
        %v1688 = vrot.slane %v407, %v1687
        %v1689 = vlaneseq
        %v1690 = vshrl.u32 %v1689, 7
        %v1691 = vsub.s32 1, %v1690
        %v1692 = vrot.slane %v408, %v1691
        %v1693 = vlaneseq
        %v1694 = vshrl.u32 %v1693, 7
        %v1695 = vsub.s32 1, %v1694
        %v1696 = vrot.slane %v409, %v1695
        %v1697 = vlaneseq
        %v1698 = vshrl.u32 %v1697, 7
        %v1699 = vsub.s32 1, %v1698
        %v1700 = vrot.slane %v410, %v1699
        %v1701 = vmul.f32 %v1610, %v1688
        %v1702 = vmul.f32 %v1612, %v1692
        %v1703 = vmul.f32 %v1681, %v1696
        %v1704 = vmul.f32 %v1683, %v1700
        %v1705 = vlaneseq
        %v1706 = vshrl.u32 %v1705, 7
        %v1707 = vsub.s32 5, %v1706
        %v1708 = vrot.slane %v401, %v1707
        %v1709 = vlaneseq
        %v1710 = vshrl.u32 %v1709, 7
        %v1711 = vsub.s32 5, %v1710
        %v1712 = vrot.slane %v402, %v1711
        %v1713 = vlaneseq
        %v1714 = vshrl.u32 %v1713, 7
        %v1715 = vsub.s32 5, %v1714
        %v1716 = vrot.slane %v403, %v1715
        %v1717 = vlaneseq
        %v1718 = vshrl.u32 %v1717, 7
        %v1719 = vsub.s32 5, %v1718
        %v1720 = vrot.slane %v404, %v1719
        %v1721 = vadd.f32 %v1701, %v1708
        %v1722 = vadd.f32 %v1702, %v1712
        %v1723 = vadd.f32 %v1703, %v1716
        %v1724 = vadd.f32 %v1704, %v1720
        %v1725 = vmul.f32 %v1721, 0.5
        %v1726 = vmul.f32 %v1722, 0.5
        %v1727 = vmul.f32 %v1723, 0.5
        %v1728 = vmul.f32 %v1724, 0.5
        %v1729 = vmul.f32 %v1721, 0.70710677
        %v1730 = vmul.f32 %v1722, 0.70710677
        %v1731 = vmul.f32 %v1723, 0.70710677
        %v1732 = vmul.f32 %v1724, 0.70710677
        %v1733 = verf.f32.pop %v1729
        %v1734 = verf.f32.pop %v1730
        %v1735 = verf.f32.pop %v1731
        %v1736 = verf.f32.pop %v1732
        %v1737 = vadd.f32 %v1733, 1.0
        %v1738 = vadd.f32 %v1734, 1.0
        %v1739 = vadd.f32 %v1735, 1.0
        %v1740 = vadd.f32 %v1736, 1.0
        %v1741 = vmul.f32 %v1725, %v1737
        %v1742 = vmul.f32 %v1726, %v1738
        %v1743 = vmul.f32 %v1727, %v1739
        %v1744 = vmul.f32 %v1728, %v1740
        %1745 = vst [vmem:[#allocation4] sm:$0xff] %v1741
        %1746 = vst [vmem:[#allocation4 + $0x8] sm:$0xff] %v1742
        %1747 = vst [vmem:[#allocation4 + $0x10] sm:$0xff] %v1743
        %1748 = vst [vmem:[#allocation4 + $0x18] sm:$0xff] %v1744
        %v1749 = vld [vmem:[#allocation4] sm:$0xff]
        %v1750 = vld [vmem:[#allocation4 + $0x8] sm:$0xff]
        %v1751 = vld [vmem:[#allocation4 + $0x10] sm:$0xff]
        %v1752 = vld [vmem:[#allocation4 + $0x18] sm:$0xff]
        %v1753 = vld [vmem:[%s336] sm:$0xff]
        %v1754 = vld [vmem:[%s336 + $0x8] sm:$0xff]
        %v1755 = vld [vmem:[%s336 + $0x10] sm:$0xff]
        %v1756 = vld [vmem:[%s336 + $0x18] sm:$0xff]
        %v1757 = vld [vmem:[%s336 + $0x20] sm:$0xff]
        %v1758 = vld [vmem:[%s336 + $0x28] sm:$0xff]
        %v1759 = vld [vmem:[%s336 + $0x30] sm:$0xff]
        %v1760 = vld [vmem:[%s336 + $0x38] sm:$0xff]
        %v1761 = vld [vmem:[%s336 + $0x40] sm:$0xff]
        %v1762 = vld [vmem:[%s336 + $0x48] sm:$0xff]
        %v1763 = vld [vmem:[%s336 + $0x50] sm:$0xff]
        %v1764 = vld [vmem:[%s336 + $0x58] sm:$0xff]
        %v1765 = vld [vmem:[%s336 + $0x60] sm:$0xff]
        %v1766 = vld [vmem:[%s336 + $0x68] sm:$0xff]
        %v1767 = vld [vmem:[%s336 + $0x70] sm:$0xff]
        %v1768 = vld [vmem:[%s336 + $0x78] sm:$0xff]
        %v1769 = vunpack.c.0.s8 %v1753
        %v1770 = vunpack.c.1.s8 %v1753
        %v1771 = vunpack.c.2.s8 %v1753
        %v1772 = vunpack.c.3.s8 %v1753
        %v1773 = vunpack.c.0.s8 %v1754
        %v1774 = vunpack.c.1.s8 %v1754
        %v1775 = vunpack.c.2.s8 %v1754
        %v1776 = vunpack.c.3.s8 %v1754
        %v1777 = vunpack.c.0.s8 %v1755
        %v1778 = vunpack.c.1.s8 %v1755
        %v1779 = vunpack.c.2.s8 %v1755
        %v1780 = vunpack.c.3.s8 %v1755
        %v1781 = vunpack.c.0.s8 %v1756
        %v1782 = vunpack.c.1.s8 %v1756
        %v1783 = vunpack.c.2.s8 %v1756
        %v1784 = vunpack.c.3.s8 %v1756
        %v1785 = vunpack.c.0.s8 %v1757
        %v1786 = vunpack.c.1.s8 %v1757
        %v1787 = vunpack.c.2.s8 %v1757
        %v1788 = vunpack.c.3.s8 %v1757
        %v1789 = vunpack.c.0.s8 %v1758
        %v1790 = vunpack.c.1.s8 %v1758
        %v1791 = vunpack.c.2.s8 %v1758
        %v1792 = vunpack.c.3.s8 %v1758
        %v1793 = vunpack.c.0.s8 %v1759
        %v1794 = vunpack.c.1.s8 %v1759
        %v1795 = vunpack.c.2.s8 %v1759
        %v1796 = vunpack.c.3.s8 %v1759
        %v1797 = vunpack.c.0.s8 %v1760
        %v1798 = vunpack.c.1.s8 %v1760
        %v1799 = vunpack.c.2.s8 %v1760
        %v1800 = vunpack.c.3.s8 %v1760
        %v1801 = vunpack.c.0.s8 %v1761
        %v1802 = vunpack.c.1.s8 %v1761
        %v1803 = vunpack.c.2.s8 %v1761
        %v1804 = vunpack.c.3.s8 %v1761
        %v1805 = vunpack.c.0.s8 %v1762
        %v1806 = vunpack.c.1.s8 %v1762
        %v1807 = vunpack.c.2.s8 %v1762
        %v1808 = vunpack.c.3.s8 %v1762
        %v1809 = vunpack.c.0.s8 %v1763
        %v1810 = vunpack.c.1.s8 %v1763
        %v1811 = vunpack.c.2.s8 %v1763
        %v1812 = vunpack.c.3.s8 %v1763
        %v1813 = vunpack.c.0.s8 %v1764
        %v1814 = vunpack.c.1.s8 %v1764
        %v1815 = vunpack.c.2.s8 %v1764
        %v1816 = vunpack.c.3.s8 %v1764
        %v1817 = vunpack.c.0.s8 %v1765
        %v1818 = vunpack.c.1.s8 %v1765
        %v1819 = vunpack.c.2.s8 %v1765
        %v1820 = vunpack.c.3.s8 %v1765
        %v1821 = vunpack.c.0.s8 %v1766
        %v1822 = vunpack.c.1.s8 %v1766
        %v1823 = vunpack.c.2.s8 %v1766
        %v1824 = vunpack.c.3.s8 %v1766
        %v1825 = vunpack.c.0.s8 %v1767
        %v1826 = vunpack.c.1.s8 %v1767
        %v1827 = vunpack.c.2.s8 %v1767
        %v1828 = vunpack.c.3.s8 %v1767
        %v1829 = vunpack.c.0.s8 %v1768
        %v1830 = vunpack.c.1.s8 %v1768
        %v1831 = vunpack.c.2.s8 %v1768
        %v1832 = vunpack.c.3.s8 %v1768
        %v1833 = vcvt.s32.f32 %v1769
        %v1834 = vcvt.s32.f32 %v1770
        %v1835 = vcvt.s32.f32 %v1771
        %v1836 = vcvt.s32.f32 %v1772
        %v1837 = vcvt.s32.f32 %v1773
        %v1838 = vcvt.s32.f32 %v1774
        %v1839 = vcvt.s32.f32 %v1775
        %v1840 = vcvt.s32.f32 %v1776
        %v1841 = vcvt.s32.f32 %v1777
        %v1842 = vcvt.s32.f32 %v1778
        %v1843 = vcvt.s32.f32 %v1779
        %v1844 = vcvt.s32.f32 %v1780
        %v1845 = vcvt.s32.f32 %v1781
        %v1846 = vcvt.s32.f32 %v1782
        %v1847 = vcvt.s32.f32 %v1783
        %v1848 = vcvt.s32.f32 %v1784
        %v1849 = vcvt.s32.f32 %v1785
        %v1850 = vcvt.s32.f32 %v1786
        %v1851 = vcvt.s32.f32 %v1787
        %v1852 = vcvt.s32.f32 %v1788
        %v1853 = vcvt.s32.f32 %v1789
        %v1854 = vcvt.s32.f32 %v1790
        %v1855 = vcvt.s32.f32 %v1791
        %v1856 = vcvt.s32.f32 %v1792
        %v1857 = vcvt.s32.f32 %v1793
        %v1858 = vcvt.s32.f32 %v1794
        %v1859 = vcvt.s32.f32 %v1795
        %v1860 = vcvt.s32.f32 %v1796
        %v1861 = vcvt.s32.f32 %v1797
        %v1862 = vcvt.s32.f32 %v1798
        %v1863 = vcvt.s32.f32 %v1799
        %v1864 = vcvt.s32.f32 %v1800
        %v1865 = vcvt.s32.f32 %v1801
        %v1866 = vcvt.s32.f32 %v1802
        %v1867 = vcvt.s32.f32 %v1803
        %v1868 = vcvt.s32.f32 %v1804
        %v1869 = vcvt.s32.f32 %v1805
        %v1870 = vcvt.s32.f32 %v1806
        %v1871 = vcvt.s32.f32 %v1807
        %v1872 = vcvt.s32.f32 %v1808
        %v1873 = vcvt.s32.f32 %v1809
        %v1874 = vcvt.s32.f32 %v1810
        %v1875 = vcvt.s32.f32 %v1811
        %v1876 = vcvt.s32.f32 %v1812
        %v1877 = vcvt.s32.f32 %v1813
        %v1878 = vcvt.s32.f32 %v1814
        %v1879 = vcvt.s32.f32 %v1815
        %v1880 = vcvt.s32.f32 %v1816
        %v1881 = vcvt.s32.f32 %v1817
        %v1882 = vcvt.s32.f32 %v1818
        %v1883 = vcvt.s32.f32 %v1819
        %v1884 = vcvt.s32.f32 %v1820
        %v1885 = vcvt.s32.f32 %v1821
        %v1886 = vcvt.s32.f32 %v1822
        %v1887 = vcvt.s32.f32 %v1823
        %v1888 = vcvt.s32.f32 %v1824
        %v1889 = vcvt.s32.f32 %v1825
        %v1890 = vcvt.s32.f32 %v1826
        %v1891 = vcvt.s32.f32 %v1827
        %v1892 = vcvt.s32.f32 %v1828
        %v1893 = vcvt.s32.f32 %v1829
        %v1894 = vcvt.s32.f32 %v1830
        %v1895 = vcvt.s32.f32 %v1831
        %v1896 = vcvt.s32.f32 %v1832
        %1897 = vmatprep.subr.mxu0 0.0
        %1898 = vmatpush1.msra.mxu0 %v1833
        %1899 = vmatprep.subr.mxu0 0.0
        %1900 = vmatpush1.msra.mxu0 %v1834
        %1901 = vmatprep.subr.mxu0 0.0
        %1902 = vmatpush1.msra.mxu0 %v1835
        %1903 = vmatprep.subr.mxu0 0.0
        %1904 = vmatpush1.msra.mxu0 %v1836
        %1905 = vmatprep.subr.mxu0 0.0
        %1906 = vmatpush1.msra.mxu0 %v1837
        %1907 = vmatprep.subr.mxu0 0.0
        %1908 = vmatpush1.msra.mxu0 %v1838
        %1909 = vmatprep.subr.mxu0 0.0
        %1910 = vmatpush1.msra.mxu0 %v1839
        %1911 = vmatprep.subr.mxu0 0.0
        %1912 = vmatpush1.msra.mxu0 %v1840
        %1913 = vmatprep.subr.mxu0 0.0
        %1914 = vmatpush1.msra.mxu0 %v1841
        %1915 = vmatprep.subr.mxu0 0.0
        %1916 = vmatpush1.msra.mxu0 %v1842
        %1917 = vmatprep.subr.mxu0 0.0
        %1918 = vmatpush1.msra.mxu0 %v1843
        %1919 = vmatprep.subr.mxu0 0.0
        %1920 = vmatpush1.msra.mxu0 %v1844
        %1921 = vmatprep.subr.mxu0 0.0
        %1922 = vmatpush1.msra.mxu0 %v1845
        %1923 = vmatprep.subr.mxu0 0.0
        %1924 = vmatpush1.msra.mxu0 %v1846
        %1925 = vmatprep.subr.mxu0 0.0
        %1926 = vmatpush1.msra.mxu0 %v1847
        %1927 = vmatprep.subr.mxu0 0.0
        %1928 = vmatpush1.msra.mxu0 %v1848
        %1929 = vmatprep.subr.mxu0 0.0
        %1930 = vmatpush1.msra.mxu0 %v1849
        %1931 = vmatprep.subr.mxu0 0.0
        %1932 = vmatpush1.msra.mxu0 %v1850
        %1933 = vmatprep.subr.mxu0 0.0
        %1934 = vmatpush1.msra.mxu0 %v1851
        %1935 = vmatprep.subr.mxu0 0.0
        %1936 = vmatpush1.msra.mxu0 %v1852
        %1937 = vmatprep.subr.mxu0 0.0
        %1938 = vmatpush1.msra.mxu0 %v1853
        %1939 = vmatprep.subr.mxu0 0.0
        %1940 = vmatpush1.msra.mxu0 %v1854
        %1941 = vmatprep.subr.mxu0 0.0
        %1942 = vmatpush1.msra.mxu0 %v1855
        %1943 = vmatprep.subr.mxu0 0.0
        %1944 = vmatpush1.msra.mxu0 %v1856
        %1945 = vmatprep.subr.mxu0 0.0
        %1946 = vmatpush1.msra.mxu0 %v1857
        %1947 = vmatprep.subr.mxu0 0.0
        %1948 = vmatpush1.msra.mxu0 %v1858
        %1949 = vmatprep.subr.mxu0 0.0
        %1950 = vmatpush1.msra.mxu0 %v1859
        %1951 = vmatprep.subr.mxu0 0.0
        %1952 = vmatpush1.msra.mxu0 %v1860
        %1953 = vmatprep.subr.mxu0 0.0
        %1954 = vmatpush1.msra.mxu0 %v1861
        %1955 = vmatprep.subr.mxu0 0.0
        %1956 = vmatpush1.msra.mxu0 %v1862
        %1957 = vmatprep.subr.mxu0 0.0
        %1958 = vmatpush1.msra.mxu0 %v1863
        %1959 = vmatprep.subr.mxu0 0.0
        %1960 = vmatpush1.msra.mxu0 %v1864
        %1961 = vmatprep.mubr.f32.mxu0 %v1750
        %1962 = vmatmul.mubr.f32.gmra.mrb[0].mxu0 %v1749
        %v1963 = vpop.f32.mrb[0].mxu0
        %v1964 = vadd.f32 0.0, %v1963
        %v1965 = vpop.f32.mrb[0].mxu0
        %1966 = vdwg.mxu0
        %1967 = vmatprep.subr.mxu0 0.0
        %1968 = vmatpush1.msra.mxu0 %v1865
        %1969 = vmatprep.subr.mxu0 0.0
        %1970 = vmatpush1.msra.mxu0 %v1866
        %1971 = vmatprep.subr.mxu0 0.0
        %1972 = vmatpush1.msra.mxu0 %v1867
        %1973 = vmatprep.subr.mxu0 0.0
        %1974 = vmatpush1.msra.mxu0 %v1868
        %1975 = vmatprep.subr.mxu0 0.0
        %1976 = vmatpush1.msra.mxu0 %v1869
        %1977 = vmatprep.subr.mxu0 0.0
        %1978 = vmatpush1.msra.mxu0 %v1870
        %1979 = vmatprep.subr.mxu0 0.0
        %1980 = vmatpush1.msra.mxu0 %v1871
        %1981 = vmatprep.subr.mxu0 0.0
        %1982 = vmatpush1.msra.mxu0 %v1872
        %1983 = vmatprep.subr.mxu0 0.0
        %1984 = vmatpush1.msra.mxu0 %v1873
        %1985 = vmatprep.subr.mxu0 0.0
        %1986 = vmatpush1.msra.mxu0 %v1874
        %1987 = vmatprep.subr.mxu0 0.0
        %1988 = vmatpush1.msra.mxu0 %v1875
        %1989 = vmatprep.subr.mxu0 0.0
        %1990 = vmatpush1.msra.mxu0 %v1876
        %1991 = vmatprep.subr.mxu0 0.0
        %1992 = vmatpush1.msra.mxu0 %v1877
        %1993 = vmatprep.subr.mxu0 0.0
        %1994 = vmatpush1.msra.mxu0 %v1878
        %1995 = vmatprep.subr.mxu0 0.0
        %1996 = vmatpush1.msra.mxu0 %v1879
        %1997 = vmatprep.subr.mxu0 0.0
        %1998 = vmatpush1.msra.mxu0 %v1880
        %1999 = vmatprep.subr.mxu0 0.0
        %2000 = vmatpush1.msra.mxu0 %v1881
        %2001 = vmatprep.subr.mxu0 0.0
        %2002 = vmatpush1.msra.mxu0 %v1882
        %2003 = vmatprep.subr.mxu0 0.0
        %2004 = vmatpush1.msra.mxu0 %v1883
        %2005 = vmatprep.subr.mxu0 0.0
        %2006 = vmatpush1.msra.mxu0 %v1884
        %2007 = vmatprep.subr.mxu0 0.0
        %2008 = vmatpush1.msra.mxu0 %v1885
        %2009 = vmatprep.subr.mxu0 0.0
        %2010 = vmatpush1.msra.mxu0 %v1886
        %2011 = vmatprep.subr.mxu0 0.0
        %2012 = vmatpush1.msra.mxu0 %v1887
        %2013 = vmatprep.subr.mxu0 0.0
        %2014 = vmatpush1.msra.mxu0 %v1888
        %2015 = vmatprep.subr.mxu0 0.0
        %2016 = vmatpush1.msra.mxu0 %v1889
        %2017 = vmatprep.subr.mxu0 0.0
        %2018 = vmatpush1.msra.mxu0 %v1890
        %2019 = vmatprep.subr.mxu0 0.0
        %2020 = vmatpush1.msra.mxu0 %v1891
        %2021 = vmatprep.subr.mxu0 0.0
        %2022 = vmatpush1.msra.mxu0 %v1892
        %2023 = vmatprep.subr.mxu0 0.0
        %2024 = vmatpush1.msra.mxu0 %v1893
        %2025 = vmatprep.subr.mxu0 0.0
        %2026 = vmatpush1.msra.mxu0 %v1894
        %2027 = vmatprep.subr.mxu0 0.0
        %2028 = vmatpush1.msra.mxu0 %v1895
        %2029 = vmatprep.subr.mxu0 0.0
        %2030 = vmatpush1.msra.mxu0 %v1896
        %2031 = vmatprep.mubr.f32.mxu0 %v1752
        %2032 = vmatmul.mubr.f32.gmra.mrb[0].mxu0 %v1751
        %v2033 = vpop.f32.mrb[0].mxu0
        %v2034 = vadd.f32 %v1964, %v2033
        %v2035 = vpop.f32.mrb[0].mxu0
        %2036 = vdwg.mxu0
        %v2037 = vlaneseq
        %v2038 = vshrl.u32 %v2037, 7
        %v2039 = vsub.s32 2, %v2038
        %v2040 = vrot.slane %v407, %v2039
        %v2041 = vmul.f32 %v2034, %v2040
        %v2042 = vlaneseq
        %v2043 = vshrl.u32 %v2042, 7
        %v2044 = vsub.s32 6, %v2043
        %v2045 = vrot.slane %v401, %v2044
        %v2046 = vadd.f32 %v2041, %v2045
        %v2047 = vadd.f32 %v2046, %v1377
        %2048 = vst [vmem:[%s6] sm:$0xff] %v2047
        // Predicated region
        $region65: #{transformer_network_forward.1} parent=43 // pred_check
          %p2049 = pneg %p190
        $region66: #{transformer_network_forward.1} parent=43 // pred_check_branch
          %2051 = sbr.rel (%p2049) target = $region68
        $region67: #{transformer_network_forward.1} parent=43 // pred_region
          _
        $region68: #{transformer_network_forward.1} parent=43 // pred_fallthru
          _
        // Predicated region
        $region69: #{transformer_network_forward.1} parent=43 // pred_check
          %p2052 = pneg %p190
        $region70: #{transformer_network_forward.1} parent=43 // pred_check_branch
          %2054 = sbr.rel (%p2052) target = $region72
        $region71: #{transformer_network_forward.1} parent=43 // pred_region
          _
        $region72: #{transformer_network_forward.1} parent=43 // pred_fallthru
          _
      $region44: #{transformer_network_forward.1} parent=5 // pred_fallthru
        _
      %p2055 = scmp.le.s32.totalorder 2, %s21
      // Predicated region
      $region73: #{transformer_network_forward.1} parent=5 // pred_check
        %p2056 = pneg %p2055
      $region74: #{transformer_network_forward.1} parent=5 // pred_check_branch
        %2058 = sbr.rel (%p2056) target = $region76
      $region75: #{transformer_network_forward.1} parent=5 // pred_region
        %s2059 = ssub.s32 %s21, 2
      $region76: #{transformer_network_forward.1} parent=5 // pred_fallthru
        _
    $region6: #{transformer_network_forward.1} parent=1 // loop_footer
      %s25 = sadd.s32 1, %s21
    $region7: #{transformer_network_forward.1} parent=1 // loop_footer_branch
      %20 = sbr.rel target = $region3
    $region8: #{transformer_network_forward.1} parent=1 // loop_exit
      _
    %2060 = vsyncpa [#allocation6], 1
    %s2061 = scalar_lea.sflag [#allocation6], 1
    %2062 = vsyncpa %s2061, 1
    %2063 = vsyncpa [#allocation8], 1
    %s2064 = scalar_lea.sflag [#allocation8], 1
    %2065 = vsyncpa %s2064, 1
    %2066 = vsyncpa [#allocation11], 1
    %s2067 = scalar_lea.sflag [#allocation11], 1
    %2068 = vsyncpa %s2067, 1

</llo_original>
